<compile_context>
chip_gen: v7x
topology: tpu7x:2x2x1
jax: 0.10.0
libtpu: 0.0.40
codegen_flags: <defaults>
</compile_context>

<pallas_src>
import functools

import jax
import jax.numpy as jnp
from jax.experimental import pallas as pl
from jax.experimental.pallas import tpu as pltpu


def _round_up(x, m):
    return ((x + m - 1) // m) * m


# ----------------------------- Pallas kernels -----------------------------

def _matmul_kernel(a_ref, b_ref, o_ref):
    o_ref[...] = jnp.dot(a_ref[...], b_ref[...],
                         preferred_element_type=jnp.float32)


def matmul_pallas(a, b, tm_max=512):
    """(M,K) @ (K,N) -> (M,N).  M-tiled ("parallel") MXU matmul, bf16 inputs,
    f32 accumulation/output.  K and N are kept whole (small for this model)."""
    M, K = a.shape
    K2, N = b.shape
    assert K == K2
    a16 = a.astype(jnp.bfloat16)
    b16 = b.astype(jnp.bfloat16)

    Mp = _round_up(M, 16)                     # bf16 sublane packing
    tm = Mp if Mp <= tm_max else tm_max       # biggest tile that fits easily in VMEM
    Mp = _round_up(Mp, tm)
    if Mp != M:
        a16 = jnp.pad(a16, ((0, Mp - M), (0, 0)))
    grid_m = Mp // tm

    out = pl.pallas_call(
        _matmul_kernel,
        out_shape=jax.ShapeDtypeStruct((Mp, N), jnp.float32),
        grid=(grid_m,),
        in_specs=[pl.BlockSpec((tm, K), lambda i: (i, 0)),
                  pl.BlockSpec((K, N), lambda i: (0, 0))],
        out_specs=pl.BlockSpec((tm, N), lambda i: (i, 0)),
        compiler_params=pltpu.CompilerParams(
            dimension_semantics=("parallel",)),
    )(a16, b16)
    return out[:M]


def _maxpool_kernel(xph_ref, o_ref, *, n, k, s, ho, wo):
    """k x k / stride s max-pool.  Input is phase-decomposed: row block
    ph = (kh%s)*s + (kw%s) holds x[:, kh%s::s, kw%s::s, :], so every tap is a
    contiguous static window -- the running max stays entirely in VMEM/vregs."""
    acc = None
    for kh in range(k):
        for kw in range(k):
            ph = (kh % s) * s + (kw % s)
            a = kh // s
            b = kw // s
            w = xph_ref[ph * n:(ph + 1) * n, a:a + ho, b:b + wo, :]
            acc = w if acc is None else jnp.maximum(acc, w)
    o_ref[...] = acc


def maxpool2d_pallas(x, k, s):
    """Max-pool (k, stride s) on NHWC without materializing a (k*k, M, C) stack."""
    N, H, W, C = x.shape
    Ho = (H - k) // s + 1
    Wo = (W - k) // s + 1
    Hq = -(-H // s)
    Wq = -(-W // s)
    xp = jnp.pad(x, ((0, 0), (0, Hq * s - H), (0, Wq * s - W), (0, 0)))
    # phase decomposition (pure layout transform): (s*s*N, Hq, Wq, C)
    xph = (xp.reshape(N, Hq, s, Wq, s, C)
             .transpose(2, 4, 0, 1, 3, 5)
             .reshape(s * s * N, Hq, Wq, C))
    return pl.pallas_call(
        functools.partial(_maxpool_kernel, n=N, k=k, s=s, ho=Ho, wo=Wo),
        out_shape=jax.ShapeDtypeStruct((N, Ho, Wo, C), jnp.float32),
        grid=(1,),
        in_specs=[pl.BlockSpec((s * s * N, Hq, Wq, C), lambda i: (0, 0, 0, 0))],
        out_specs=pl.BlockSpec((N, Ho, Wo, C), lambda i: (0, 0, 0, 0)),
    )(xph)


def _affine_kernel(x_ref, s_ref, b_ref, o_ref, *, relu):
    y = x_ref[...] * s_ref[...] + b_ref[...]
    if relu:
        y = jnp.maximum(y, 0.0)
    o_ref[...] = y


def affine_pallas(x4, scale_c, bias_c, relu):
    """Folded-BN per-channel affine (+optional ReLU) on a lane-dense
    (N, H*W*C) view; scale/bias tiled across H*W."""
    N, H, W, C = x4.shape
    L = H * W * C
    tile = lambda v: jnp.tile(v.astype(jnp.float32), H * W).reshape(1, L)
    y = pl.pallas_call(
        functools.partial(_affine_kernel, relu=relu),
        out_shape=jax.ShapeDtypeStruct((N, L), jnp.float32),
        grid=(1,),
        in_specs=[pl.BlockSpec((N, L), lambda i: (0, 0)),
                  pl.BlockSpec((1, L), lambda i: (0, 0)),
                  pl.BlockSpec((1, L), lambda i: (0, 0))],
        out_specs=pl.BlockSpec((N, L), lambda i: (0, 0)),
    )(x4.reshape(N, L), tile(scale_c), tile(bias_c))
    return y.reshape(N, H, W, C)


def _bn_add_relu_kernel(a_ref, sa_ref, ba_ref, r_ref, sr_ref, br_ref, o_ref):
    y = (a_ref[...] * sa_ref[...] + ba_ref[...]) \
        + (r_ref[...] * sr_ref[...] + br_ref[...])
    o_ref[...] = jnp.maximum(y, 0.0)


def bn_add_relu_pallas(a4, sa_c, ba_c, r4, sr_c, br_c):
    """Fused block epilogue: relu( bn2(main) + bn_ds(residual) ).  For the
    identity path pass scale=1, bias=0.  Lane-dense (N, H*W*C) layout."""
    N, H, W, C = a4.shape
    L = H * W * C
    tile = lambda v: jnp.tile(v.astype(jnp.float32), H * W).reshape(1, L)
    y = pl.pallas_call(
        _bn_add_relu_kernel,
        out_shape=jax.ShapeDtypeStruct((N, L), jnp.float32),
        grid=(1,),
        in_specs=[pl.BlockSpec((N, L), lambda i: (0, 0)),
                  pl.BlockSpec((1, L), lambda i: (0, 0)),
                  pl.BlockSpec((1, L), lambda i: (0, 0)),
                  pl.BlockSpec((N, L), lambda i: (0, 0)),
                  pl.BlockSpec((1, L), lambda i: (0, 0)),
                  pl.BlockSpec((1, L), lambda i: (0, 0))],
        out_specs=pl.BlockSpec((N, L), lambda i: (0, 0)),
    )(a4.reshape(N, L), tile(sa_c), tile(ba_c),
      r4.reshape(N, L), tile(sr_c), tile(br_c))
    return y.reshape(N, H, W, C)


# ------------------------------ layer helpers ------------------------------

def conv2d(x, w, stride, padding):
    """x: (N,H,W,Cin) NHWC.  w: PyTorch layout (Cout,Cin,Kh,Kw).  No bias.
    im2col patch gather stays in JAX (tiny here); matmul runs on the MXU."""
    # TODO(synk): for large resolutions move the Kh*Kw tap loop into the conv
    #             kernel (per-tap windowed BlockSpecs) to avoid the HBM patch
    #             blow-up; at these shapes it is negligible.
    N, H, W, Cin = x.shape
    Cout, _, Kh, Kw = w.shape
    if padding:
        x = jnp.pad(x, ((0, 0), (padding, padding), (padding, padding), (0, 0)))
    Hp, Wp = x.shape[1], x.shape[2]
    Ho = (Hp - Kh) // stride + 1
    Wo = (Wp - Kw) // stride + 1
    patches = []
    for kh in range(Kh):
        for kw in range(Kw):
            patches.append(
                x[:, kh:kh + stride * Ho:stride, kw:kw + stride * Wo:stride, :])
    p = jnp.concatenate(patches, axis=-1)                 # (N,Ho,Wo,Kh*Kw*Cin)
    pm = p.reshape(N * Ho * Wo, Kh * Kw * Cin)
    wm = jnp.transpose(w, (2, 3, 1, 0)).reshape(Kh * Kw * Cin, Cout)
    y = matmul_pallas(pm, wm)
    return y.reshape(N, Ho, Wo, Cout)


def bn_scale_bias(y4, gamma, beta, eps=1e-5):
    """PyTorch training-mode BN folded to per-channel scale/bias (plain jnp)."""
    C = y4.shape[-1]
    ym = y4.reshape(-1, C)
    mean = jnp.mean(ym, axis=0)
    var = jnp.mean(jnp.square(ym - mean[None, :]), axis=0)
    scale = gamma / jnp.sqrt(var + eps)
    bias = beta - mean * scale
    return scale, bias


def basic_block(x, p, stride, has_downsample):
    out1 = conv2d(x, p['conv1'], stride=stride, padding=1)
    s1, b1 = bn_scale_bias(out1, p['bn1_g'], p['bn1_b'])
    h = affine_pallas(out1, s1, b1, relu=True)

    out2 = conv2d(h, p['conv2'], stride=1, padding=1)
    s2, b2 = bn_scale_bias(out2, p['bn2_g'], p['bn2_b'])

    if has_downsample:
        # conv1x1(s=1) then MaxPool(k=1, s=stride)  ==  subsample then conv1x1
        x_ds = x[:, ::stride, ::stride, :]
        idn = conv2d(x_ds, p['ds_conv'], stride=1, padding=0)
        sd, bd = bn_scale_bias(idn, p['ds_bn_g'], p['ds_bn_b'])
    else:
        idn = x
        C = out2.shape[-1]
        sd = jnp.ones((C,), jnp.float32)
        bd = jnp.zeros((C,), jnp.float32)

    # fused: relu( bn2(out2) + [bn_ds(idn) | idn] )  -- single kernel
    return bn_add_relu_pallas(out2, s2, b2, idn, sd, bd)


def resnet_forward(x_nchw, params):
    # NCHW (PyTorch) -> NHWC so channels sit on the 128-lane axis
    x = jnp.transpose(x_nchw, (0, 2, 3, 1)).astype(jnp.float32)

    # stem: conv7x7(s=1) + MaxPool(k=1,s=2) folded into one stride-2 conv,
    #       then MaxPool(k=3,s=2) -> BN -> ReLU
    out = conv2d(x, params['conv1'], stride=2, padding=0)
    out = maxpool2d_pallas(out, k=3, s=2)
    s, b = bn_scale_bias(out, params['bn1_g'], params['bn1_b'])
    out = affine_pallas(out, s, b, relu=True)

    # stages: num_blocks=[1,1], width=[8,16], stride=[1,2]
    out = basic_block(out, params['layer1_0'], stride=1, has_downsample=False)
    out = basic_block(out, params['layer2_0'], stride=2, has_downsample=True)

    # AdaptiveAvgPool2d(1) -> flatten -> fc   (tiny; plain jnp, XLA fuses it)
    feat = jnp.mean(out, axis=(1, 2))                         # (N, C_last)
    logits = feat @ params['fc_w'].T + params['fc_b'][None, :]
    return logits


# ------------------------------ params / main ------------------------------

def init_params(key, stem_width=8, widths=(8, 16), num_classes=10):
    ks = jax.random.split(key, 8)
    n = lambda k, shape: (jax.random.normal(k, shape, jnp.float32) * 0.1)
    p = {
        'conv1': n(ks[0], (stem_width, 3, 7, 7)),
        'bn1_g': jnp.ones((stem_width,), jnp.float32),
        'bn1_b': jnp.zeros((stem_width,), jnp.float32),
        'layer1_0': {
            'conv1': n(ks[1], (widths[0], stem_width, 3, 3)),
            'bn1_g': jnp.ones((widths[0],)), 'bn1_b': jnp.zeros((widths[0],)),
            'conv2': n(ks[2], (widths[0], widths[0], 3, 3)),
            'bn2_g': jnp.ones((widths[0],)), 'bn2_b': jnp.zeros((widths[0],)),
        },
        'layer2_0': {
            'conv1': n(ks[3], (widths[1], widths[0], 3, 3)),
            'bn1_g': jnp.ones((widths[1],)), 'bn1_b': jnp.zeros((widths[1],)),
            'conv2': n(ks[4], (widths[1], widths[1], 3, 3)),
            'bn2_g': jnp.ones((widths[1],)), 'bn2_b': jnp.zeros((widths[1],)),
            'ds_conv': n(ks[5], (widths[1], widths[0], 1, 1)),
            'ds_bn_g': jnp.ones((widths[1],)), 'ds_bn_b': jnp.zeros((widths[1],)),
        },
        'fc_w': n(ks[6], (num_classes, widths[1])),
        'fc_b': jnp.zeros((num_classes,), jnp.float32),
    }
    return p


if __name__ == "__main__":
    key = jax.random.PRNGKey(0)
    kx, kp = jax.random.split(key)
    # small config: block=BasicBlock, num_blocks=[1,1], width=[8,16],
    # stride=[1,2], stem_width=8, num_classes=10
    x = jax.random.normal(kx, (2, 3, 32, 32), jnp.float32)   # NCHW like PyTorch
    params = init_params(kp)

    logits = jax.jit(resnet_forward)(x, params)
    logits = jax.block_until_ready(logits)
    assert logits.shape == (2, 10)
    assert bool(jnp.all(jnp.isfinite(logits)))
    print("KERNEL_OK")
</pallas_src>

<mosaic_0001>
module attributes {stable_mosaic.version = 11 : i64} {
  func.func @_matmul_kernel(%arg0: i32, %arg1: memref<352x147xbf16, #tpu.memory_space<vmem>>, %arg2: memref<147x8xbf16, #tpu.memory_space<vmem>>, %arg3: memref<352x8xf32, #tpu.memory_space<vmem>>) attributes {dimension_semantics = [#tpu.dimension_semantics<parallel>], iteration_bounds = array<i64: 1>, scalar_prefetch = 0 : i64, scratch_operands = 0 : i64, tpu.core_type = #tpu.core_type<tc>, window_params = [{transform_indices = @transform_0, window_bounds = array<i64: 352, 147>}, {pipeline_mode = #tpu.pipeline_mode<synchronous>, transform_indices = @transform_1, window_bounds = array<i64: 147, 8>}, {transform_indices = @transform_2, window_bounds = array<i64: 352, 8>}]} {
    %c0 = arith.constant 0 : index
    %c0_0 = arith.constant 0 : index
    %0 = vector.load %arg1[%c0, %c0_0] : memref<352x147xbf16, #tpu.memory_space<vmem>>, vector<352x147xbf16>
    %c0_1 = arith.constant 0 : index
    %c0_2 = arith.constant 0 : index
    %1 = vector.load %arg2[%c0_1, %c0_2] : memref<147x8xbf16, #tpu.memory_space<vmem>>, vector<147x8xbf16>
    %cst = arith.constant dense<0.000000e+00> : vector<352x8xf32>
    %2 = tpu.matmul %0, %1, %cst {dimension_numbers = #tpu.dot_dimension_numbers<[1], [0], [0], [1], [0, 0, 1, 1], [], []>} : vector<352x147xbf16>, vector<147x8xbf16>, vector<352x8xf32> -> vector<352x8xf32>
    %c0_3 = arith.constant 0 : index
    %c0_4 = arith.constant 0 : index
    %3 = vector.load %arg3[%c0_3, %c0_4] : memref<352x8xf32, #tpu.memory_space<vmem>>, vector<352x8xf32>
    tpu.vector_store %arg3[%c0_3, %c0_4], %2 {strides = array<i32>} : memref<352x8xf32, #tpu.memory_space<vmem>>, vector<352x8xf32>,
    return
  }
  func.func @transform_0(%arg0: i32) -> (i32, i32) {
    %c0_i32 = arith.constant 0 : i32
    %c0_i32_0 = arith.constant 0 : i32
    return %arg0, %c0_i32 : i32, i32
  }
  func.func @transform_1(%arg0: i32) -> (i32, i32) {
    %c0_i32 = arith.constant 0 : i32
    %c0_i32_0 = arith.constant 0 : i32
    %c0_i32_1 = arith.constant 0 : i32
    return %c0_i32, %c0_i32_0 : i32, i32
  }
  func.func @transform_2(%arg0: i32) -> (i32, i32) {
    %c0_i32 = arith.constant 0 : i32
    %c0_i32_0 = arith.constant 0 : i32
    return %arg0, %c0_i32 : i32, i32
  }
}

module attributes {stable_mosaic.version = 11 : i64} {
  func.func @_maxpool_kernel(%arg0: i32, %arg1: memref<8x7x7x8xf32, #tpu.memory_space<vmem>>, %arg2: memref<2x6x6x8xf32, #tpu.memory_space<vmem>>) attributes {dimension_semantics = [#tpu.dimension_semantics<arbitrary>], iteration_bounds = array<i64: 1>, scalar_prefetch = 0 : i64, scratch_operands = 0 : i64, tpu.core_type = #tpu.core_type<tc>, window_params = [{pipeline_mode = #tpu.pipeline_mode<synchronous>, transform_indices = @transform_0, window_bounds = array<i64: 8, 7, 7, 8>}, {pipeline_mode = #tpu.pipeline_mode<synchronous>, transform_indices = @transform_1, window_bounds = array<i64: 2, 6, 6, 8>}]} {
    %c0 = arith.constant 0 : index
    %c0_0 = arith.constant 0 : index
    %c0_1 = arith.constant 0 : index
    %c0_2 = arith.constant 0 : index
    %0 = vector.load %arg1[%c0, %c0_0, %c0_1, %c0_2] : memref<8x7x7x8xf32, #tpu.memory_space<vmem>>, vector<2x6x6x8xf32>
    %c2 = arith.constant 2 : index
    %c0_3 = arith.constant 0 : index
    %c0_4 = arith.constant 0 : index
    %c0_5 = arith.constant 0 : index
    %1 = vector.load %arg1[%c2, %c0_3, %c0_4, %c0_5] : memref<8x7x7x8xf32, #tpu.memory_space<vmem>>, vector<2x6x6x8xf32>
    %2 = arith.maximumf %0, %1 : vector<2x6x6x8xf32>
    %c0_6 = arith.constant 0 : index
    %c0_7 = arith.constant 0 : index
    %c1 = arith.constant 1 : index
    %c0_8 = arith.constant 0 : index
    %3 = vector.load %arg1[%c0_6, %c0_7, %c1, %c0_8] : memref<8x7x7x8xf32, #tpu.memory_space<vmem>>, vector<2x6x6x8xf32>
    %4 = arith.maximumf %2, %3 : vector<2x6x6x8xf32>
    %c4 = arith.constant 4 : index
    %c0_9 = arith.constant 0 : index
    %c0_10 = arith.constant 0 : index
    %c0_11 = arith.constant 0 : index
    %5 = vector.load %arg1[%c4, %c0_9, %c0_10, %c0_11] : memref<8x7x7x8xf32, #tpu.memory_space<vmem>>, vector<2x6x6x8xf32>
    %6 = arith.maximumf %4, %5 : vector<2x6x6x8xf32>
    %c6 = arith.constant 6 : index
    %c0_12 = arith.constant 0 : index
    %c0_13 = arith.constant 0 : index
    %c0_14 = arith.constant 0 : index
    %7 = vector.load %arg1[%c6, %c0_12, %c0_13, %c0_14] : memref<8x7x7x8xf32, #tpu.memory_space<vmem>>, vector<2x6x6x8xf32>
    %8 = arith.maximumf %6, %7 : vector<2x6x6x8xf32>
    %c4_15 = arith.constant 4 : index
    %c0_16 = arith.constant 0 : index
    %c1_17 = arith.constant 1 : index
    %c0_18 = arith.constant 0 : index
    %9 = vector.load %arg1[%c4_15, %c0_16, %c1_17, %c0_18] : memref<8x7x7x8xf32, #tpu.memory_space<vmem>>, vector<2x6x6x8xf32>
    %10 = arith.maximumf %8, %9 : vector<2x6x6x8xf32>
    %c0_19 = arith.constant 0 : index
    %c1_20 = arith.constant 1 : index
    %c0_21 = arith.constant 0 : index
    %c0_22 = arith.constant 0 : index
    %11 = vector.load %arg1[%c0_19, %c1_20, %c0_21, %c0_22] : memref<8x7x7x8xf32, #tpu.memory_space<vmem>>, vector<2x6x6x8xf32>
    %12 = arith.maximumf %10, %11 : vector<2x6x6x8xf32>
    %c2_23 = arith.constant 2 : index
    %c1_24 = arith.constant 1 : index
    %c0_25 = arith.constant 0 : index
    %c0_26 = arith.constant 0 : index
    %13 = vector.load %arg1[%c2_23, %c1_24, %c0_25, %c0_26] : memref<8x7x7x8xf32, #tpu.memory_space<vmem>>, vector<2x6x6x8xf32>
    %14 = arith.maximumf %12, %13 : vector<2x6x6x8xf32>
    %c0_27 = arith.constant 0 : index
    %c1_28 = arith.constant 1 : index
    %c1_29 = arith.constant 1 : index
    %c0_30 = arith.constant 0 : index
    %15 = vector.load %arg1[%c0_27, %c1_28, %c1_29, %c0_30] : memref<8x7x7x8xf32, #tpu.memory_space<vmem>>, vector<2x6x6x8xf32>
    %16 = arith.maximumf %14, %15 : vector<2x6x6x8xf32>
    %c0_31 = arith.constant 0 : index
    %c0_32 = arith.constant 0 : index
    %c0_33 = arith.constant 0 : index
    %c0_34 = arith.constant 0 : index
    %17 = vector.load %arg2[%c0_31, %c0_32, %c0_33, %c0_34] : memref<2x6x6x8xf32, #tpu.memory_space<vmem>>, vector<2x6x6x8xf32>
    tpu.vector_store %arg2[%c0_31, %c0_32, %c0_33, %c0_34], %16 {strides = array<i32>} : memref<2x6x6x8xf32, #tpu.memory_space<vmem>>, vector<2x6x6x8xf32>,
    return
  }
  func.func @transform_0(%arg0: i32) -> (i32, i32, i32, i32) {
    %c0_i32 = arith.constant 0 : i32
    %c0_i32_0 = arith.constant 0 : i32
    %c0_i32_1 = arith.constant 0 : i32
    %c0_i32_2 = arith.constant 0 : i32
    %c0_i32_3 = arith.constant 0 : i32
    return %c0_i32, %c0_i32_0, %c0_i32_1, %c0_i32_2 : i32, i32, i32, i32
  }
  func.func @transform_1(%arg0: i32) -> (i32, i32, i32, i32) {
    %c0_i32 = arith.constant 0 : i32
    %c0_i32_0 = arith.constant 0 : i32
    %c0_i32_1 = arith.constant 0 : i32
    %c0_i32_2 = arith.constant 0 : i32
    %c0_i32_3 = arith.constant 0 : i32
    return %c0_i32, %c0_i32_0, %c0_i32_1, %c0_i32_2 : i32, i32, i32, i32
  }
}

module attributes {stable_mosaic.version = 11 : i64} {
  func.func @_affine_kernel(%arg0: i32, %arg1: memref<2x288xf32, #tpu.memory_space<vmem>>, %arg2: memref<1x288xf32, #tpu.memory_space<vmem>>, %arg3: memref<1x288xf32, #tpu.memory_space<vmem>>, %arg4: memref<2x288xf32, #tpu.memory_space<vmem>>) attributes {dimension_semantics = [#tpu.dimension_semantics<arbitrary>], iteration_bounds = array<i64: 1>, scalar_prefetch = 0 : i64, scratch_operands = 0 : i64, tpu.core_type = #tpu.core_type<tc>, window_params = [{pipeline_mode = #tpu.pipeline_mode<synchronous>, transform_indices = @transform_0, window_bounds = array<i64: 2, 288>}, {pipeline_mode = #tpu.pipeline_mode<synchronous>, transform_indices = @transform_1, window_bounds = array<i64: 1, 288>}, {pipeline_mode = #tpu.pipeline_mode<synchronous>, transform_indices = @transform_2, window_bounds = array<i64: 1, 288>}, {pipeline_mode = #tpu.pipeline_mode<synchronous>, transform_indices = @transform_3, window_bounds = array<i64: 2, 288>}]} {
    %c0 = arith.constant 0 : index
    %c0_0 = arith.constant 0 : index
    %0 = vector.load %arg1[%c0, %c0_0] : memref<2x288xf32, #tpu.memory_space<vmem>>, vector<2x288xf32>
    %c0_1 = arith.constant 0 : index
    %c0_2 = arith.constant 0 : index
    %1 = vector.load %arg2[%c0_1, %c0_2] : memref<1x288xf32, #tpu.memory_space<vmem>>, vector<1x288xf32>
    %2 = vector.broadcast %1 : vector<1x288xf32> to vector<2x288xf32>
    %3 = arith.mulf %0, %2 : vector<2x288xf32>
    %c0_3 = arith.constant 0 : index
    %c0_4 = arith.constant 0 : index
    %4 = vector.load %arg3[%c0_3, %c0_4] : memref<1x288xf32, #tpu.memory_space<vmem>>, vector<1x288xf32>
    %5 = vector.broadcast %4 : vector<1x288xf32> to vector<2x288xf32>
    %6 = arith.addf %3, %5 : vector<2x288xf32>
    %cst = arith.constant 0.000000e+00 : f32
    %7 = vector.broadcast %cst : f32 to vector<2x288xf32>
    %8 = arith.maximumf %6, %7 : vector<2x288xf32>
    %c0_5 = arith.constant 0 : index
    %c0_6 = arith.constant 0 : index
    %9 = vector.load %arg4[%c0_5, %c0_6] : memref<2x288xf32, #tpu.memory_space<vmem>>, vector<2x288xf32>
    tpu.vector_store %arg4[%c0_5, %c0_6], %8 {strides = array<i32>} : memref<2x288xf32, #tpu.memory_space<vmem>>, vector<2x288xf32>,
    return
  }
  func.func @transform_0(%arg0: i32) -> (i32, i32) {
    %c0_i32 = arith.constant 0 : i32
    %c0_i32_0 = arith.constant 0 : i32
    %c0_i32_1 = arith.constant 0 : i32
    return %c0_i32, %c0_i32_0 : i32, i32
  }
  func.func @transform_1(%arg0: i32) -> (i32, i32) {
    %c0_i32 = arith.constant 0 : i32
    %c0_i32_0 = arith.constant 0 : i32
    %c0_i32_1 = arith.constant 0 : i32
    return %c0_i32, %c0_i32_0 : i32, i32
  }
  func.func @transform_2(%arg0: i32) -> (i32, i32) {
    %c0_i32 = arith.constant 0 : i32
    %c0_i32_0 = arith.constant 0 : i32
    %c0_i32_1 = arith.constant 0 : i32
    return %c0_i32, %c0_i32_0 : i32, i32
  }
  func.func @transform_3(%arg0: i32) -> (i32, i32) {
    %c0_i32 = arith.constant 0 : i32
    %c0_i32_0 = arith.constant 0 : i32
    %c0_i32_1 = arith.constant 0 : i32
    return %c0_i32, %c0_i32_0 : i32, i32
  }
}

module attributes {stable_mosaic.version = 11 : i64} {
  func.func @_matmul_kernel(%arg0: i32, %arg1: memref<80x72xbf16, #tpu.memory_space<vmem>>, %arg2: memref<72x8xbf16, #tpu.memory_space<vmem>>, %arg3: memref<80x8xf32, #tpu.memory_space<vmem>>) attributes {dimension_semantics = [#tpu.dimension_semantics<parallel>], iteration_bounds = array<i64: 1>, scalar_prefetch = 0 : i64, scratch_operands = 0 : i64, tpu.core_type = #tpu.core_type<tc>, window_params = [{transform_indices = @transform_0, window_bounds = array<i64: 80, 72>}, {pipeline_mode = #tpu.pipeline_mode<synchronous>, transform_indices = @transform_1, window_bounds = array<i64: 72, 8>}, {transform_indices = @transform_2, window_bounds = array<i64: 80, 8>}]} {
    %c0 = arith.constant 0 : index
    %c0_0 = arith.constant 0 : index
    %0 = vector.load %arg1[%c0, %c0_0] : memref<80x72xbf16, #tpu.memory_space<vmem>>, vector<80x72xbf16>
    %c0_1 = arith.constant 0 : index
    %c0_2 = arith.constant 0 : index
    %1 = vector.load %arg2[%c0_1, %c0_2] : memref<72x8xbf16, #tpu.memory_space<vmem>>, vector<72x8xbf16>
    %cst = arith.constant dense<0.000000e+00> : vector<80x8xf32>
    %2 = tpu.matmul %0, %1, %cst {dimension_numbers = #tpu.dot_dimension_numbers<[1], [0], [0], [1], [0, 0, 1, 1], [], []>} : vector<80x72xbf16>, vector<72x8xbf16>, vector<80x8xf32> -> vector<80x8xf32>
    %c0_3 = arith.constant 0 : index
    %c0_4 = arith.constant 0 : index
    %3 = vector.load %arg3[%c0_3, %c0_4] : memref<80x8xf32, #tpu.memory_space<vmem>>, vector<80x8xf32>
    tpu.vector_store %arg3[%c0_3, %c0_4], %2 {strides = array<i32>} : memref<80x8xf32, #tpu.memory_space<vmem>>, vector<80x8xf32>,
    return
  }
  func.func @transform_0(%arg0: i32) -> (i32, i32) {
    %c0_i32 = arith.constant 0 : i32
    %c0_i32_0 = arith.constant 0 : i32
    return %arg0, %c0_i32 : i32, i32
  }
  func.func @transform_1(%arg0: i32) -> (i32, i32) {
    %c0_i32 = arith.constant 0 : i32
    %c0_i32_0 = arith.constant 0 : i32
    %c0_i32_1 = arith.constant 0 : i32
    return %c0_i32, %c0_i32_0 : i32, i32
  }
  func.func @transform_2(%arg0: i32) -> (i32, i32) {
    %c0_i32 = arith.constant 0 : i32
    %c0_i32_0 = arith.constant 0 : i32
    return %arg0, %c0_i32 : i32, i32
  }
}

module attributes {stable_mosaic.version = 11 : i64} {
  func.func @_bn_add_relu_kernel(%arg0: i32, %arg1: memref<2x288xf32, #tpu.memory_space<vmem>>, %arg2: memref<1x288xf32, #tpu.memory_space<vmem>>, %arg3: memref<1x288xf32, #tpu.memory_space<vmem>>, %arg4: memref<2x288xf32, #tpu.memory_space<vmem>>, %arg5: memref<1x288xf32, #tpu.memory_space<vmem>>, %arg6: memref<1x288xf32, #tpu.memory_space<vmem>>, %arg7: memref<2x288xf32, #tpu.memory_space<vmem>>) attributes {dimension_semantics = [#tpu.dimension_semantics<arbitrary>], iteration_bounds = array<i64: 1>, scalar_prefetch = 0 : i64, scratch_operands = 0 : i64, tpu.core_type = #tpu.core_type<tc>, window_params = [{pipeline_mode = #tpu.pipeline_mode<synchronous>, transform_indices = @transform_0, window_bounds = array<i64: 2, 288>}, {pipeline_mode = #tpu.pipeline_mode<synchronous>, transform_indices = @transform_1, window_bounds = array<i64: 1, 288>}, {pipeline_mode = #tpu.pipeline_mode<synchronous>, transform_indices = @transform_2, window_bounds = array<i64: 1, 288>}, {pipeline_mode = #tpu.pipeline_mode<synchronous>, transform_indices = @transform_3, window_bounds = array<i64: 2, 288>}, {pipeline_mode = #tpu.pipeline_mode<synchronous>, transform_indices = @transform_4, window_bounds = array<i64: 1, 288>}, {pipeline_mode = #tpu.pipeline_mode<synchronous>, transform_indices = @transform_5, window_bounds = array<i64: 1, 288>}, {pipeline_mode = #tpu.pipeline_mode<synchronous>, transform_indices = @transform_6, window_bounds = array<i64: 2, 288>}]} {
    %c0 = arith.constant 0 : index
    %c0_0 = arith.constant 0 : index
    %0 = vector.load %arg1[%c0, %c0_0] : memref<2x288xf32, #tpu.memory_space<vmem>>, vector<2x288xf32>
    %c0_1 = arith.constant 0 : index
    %c0_2 = arith.constant 0 : index
    %1 = vector.load %arg2[%c0_1, %c0_2] : memref<1x288xf32, #tpu.memory_space<vmem>>, vector<1x288xf32>
    %2 = vector.broadcast %1 : vector<1x288xf32> to vector<2x288xf32>
    %3 = arith.mulf %0, %2 : vector<2x288xf32>
    %c0_3 = arith.constant 0 : index
    %c0_4 = arith.constant 0 : index
    %4 = vector.load %arg3[%c0_3, %c0_4] : memref<1x288xf32, #tpu.memory_space<vmem>>, vector<1x288xf32>
    %5 = vector.broadcast %4 : vector<1x288xf32> to vector<2x288xf32>
    %6 = arith.addf %3, %5 : vector<2x288xf32>
    %c0_5 = arith.constant 0 : index
    %c0_6 = arith.constant 0 : index
    %7 = vector.load %arg4[%c0_5, %c0_6] : memref<2x288xf32, #tpu.memory_space<vmem>>, vector<2x288xf32>
    %c0_7 = arith.constant 0 : index
    %c0_8 = arith.constant 0 : index
    %8 = vector.load %arg5[%c0_7, %c0_8] : memref<1x288xf32, #tpu.memory_space<vmem>>, vector<1x288xf32>
    %9 = vector.broadcast %8 : vector<1x288xf32> to vector<2x288xf32>
    %10 = arith.mulf %7, %9 : vector<2x288xf32>
    %c0_9 = arith.constant 0 : index
    %c0_10 = arith.constant 0 : index
    %11 = vector.load %arg6[%c0_9, %c0_10] : memref<1x288xf32, #tpu.memory_space<vmem>>, vector<1x288xf32>
    %12 = vector.broadcast %11 : vector<1x288xf32> to vector<2x288xf32>
    %13 = arith.addf %10, %12 : vector<2x288xf32>
    %14 = arith.addf %6, %13 : vector<2x288xf32>
    %cst = arith.constant 0.000000e+00 : f32
    %15 = vector.broadcast %cst : f32 to vector<2x288xf32>
    %16 = arith.maximumf %14, %15 : vector<2x288xf32>
    %c0_11 = arith.constant 0 : index
    %c0_12 = arith.constant 0 : index
    %17 = vector.load %arg7[%c0_11, %c0_12] : memref<2x288xf32, #tpu.memory_space<vmem>>, vector<2x288xf32>
    tpu.vector_store %arg7[%c0_11, %c0_12], %16 {strides = array<i32>} : memref<2x288xf32, #tpu.memory_space<vmem>>, vector<2x288xf32>,
    return
  }
  func.func @transform_0(%arg0: i32) -> (i32, i32) {
    %c0_i32 = arith.constant 0 : i32
    %c0_i32_0 = arith.constant 0 : i32
    %c0_i32_1 = arith.constant 0 : i32
    return %c0_i32, %c0_i32_0 : i32, i32
  }
  func.func @transform_1(%arg0: i32) -> (i32, i32) {
    %c0_i32 = arith.constant 0 : i32
    %c0_i32_0 = arith.constant 0 : i32
    %c0_i32_1 = arith.constant 0 : i32
    return %c0_i32, %c0_i32_0 : i32, i32
  }
  func.func @transform_2(%arg0: i32) -> (i32, i32) {
    %c0_i32 = arith.constant 0 : i32
    %c0_i32_0 = arith.constant 0 : i32
    %c0_i32_1 = arith.constant 0 : i32
    return %c0_i32, %c0_i32_0 : i32, i32
  }
  func.func @transform_3(%arg0: i32) -> (i32, i32) {
    %c0_i32 = arith.constant 0 : i32
    %c0_i32_0 = arith.constant 0 : i32
    %c0_i32_1 = arith.constant 0 : i32
    return %c0_i32, %c0_i32_0 : i32, i32
  }
  func.func @transform_4(%arg0: i32) -> (i32, i32) {
    %c0_i32 = arith.constant 0 : i32
    %c0_i32_0 = arith.constant 0 : i32
    %c0_i32_1 = arith.constant 0 : i32
    return %c0_i32, %c0_i32_0 : i32, i32
  }
  func.func @transform_5(%arg0: i32) -> (i32, i32) {
    %c0_i32 = arith.constant 0 : i32
    %c0_i32_0 = arith.constant 0 : i32
    %c0_i32_1 = arith.constant 0 : i32
    return %c0_i32, %c0_i32_0 : i32, i32
  }
  func.func @transform_6(%arg0: i32) -> (i32, i32) {
    %c0_i32 = arith.constant 0 : i32
    %c0_i32_0 = arith.constant 0 : i32
    %c0_i32_1 = arith.constant 0 : i32
    return %c0_i32, %c0_i32_0 : i32, i32
  }
}

module attributes {stable_mosaic.version = 11 : i64} {
  func.func @_matmul_kernel(%arg0: i32, %arg1: memref<32x72xbf16, #tpu.memory_space<vmem>>, %arg2: memref<72x16xbf16, #tpu.memory_space<vmem>>, %arg3: memref<32x16xf32, #tpu.memory_space<vmem>>) attributes {dimension_semantics = [#tpu.dimension_semantics<parallel>], iteration_bounds = array<i64: 1>, scalar_prefetch = 0 : i64, scratch_operands = 0 : i64, tpu.core_type = #tpu.core_type<tc>, window_params = [{transform_indices = @transform_0, window_bounds = array<i64: 32, 72>}, {pipeline_mode = #tpu.pipeline_mode<synchronous>, transform_indices = @transform_1, window_bounds = array<i64: 72, 16>}, {transform_indices = @transform_2, window_bounds = array<i64: 32, 16>}]} {
    %c0 = arith.constant 0 : index
    %c0_0 = arith.constant 0 : index
    %0 = vector.load %arg1[%c0, %c0_0] : memref<32x72xbf16, #tpu.memory_space<vmem>>, vector<32x72xbf16>
    %c0_1 = arith.constant 0 : index
    %c0_2 = arith.constant 0 : index
    %1 = vector.load %arg2[%c0_1, %c0_2] : memref<72x16xbf16, #tpu.memory_space<vmem>>, vector<72x16xbf16>
    %cst = arith.constant dense<0.000000e+00> : vector<32x16xf32>
    %2 = tpu.matmul %0, %1, %cst {dimension_numbers = #tpu.dot_dimension_numbers<[1], [0], [0], [1], [0, 0, 1, 1], [], []>} : vector<32x72xbf16>, vector<72x16xbf16>, vector<32x16xf32> -> vector<32x16xf32>
    %c0_3 = arith.constant 0 : index
    %c0_4 = arith.constant 0 : index
    %3 = vector.load %arg3[%c0_3, %c0_4] : memref<32x16xf32, #tpu.memory_space<vmem>>, vector<32x16xf32>
    tpu.vector_store %arg3[%c0_3, %c0_4], %2 {strides = array<i32>} : memref<32x16xf32, #tpu.memory_space<vmem>>, vector<32x16xf32>,
    return
  }
  func.func @transform_0(%arg0: i32) -> (i32, i32) {
    %c0_i32 = arith.constant 0 : i32
    %c0_i32_0 = arith.constant 0 : i32
    return %arg0, %c0_i32 : i32, i32
  }
  func.func @transform_1(%arg0: i32) -> (i32, i32) {
    %c0_i32 = arith.constant 0 : i32
    %c0_i32_0 = arith.constant 0 : i32
    %c0_i32_1 = arith.constant 0 : i32
    return %c0_i32, %c0_i32_0 : i32, i32
  }
  func.func @transform_2(%arg0: i32) -> (i32, i32) {
    %c0_i32 = arith.constant 0 : i32
    %c0_i32_0 = arith.constant 0 : i32
    return %arg0, %c0_i32 : i32, i32
  }
}

module attributes {stable_mosaic.version = 11 : i64} {
  func.func @_affine_kernel(%arg0: i32, %arg1: memref<2x144xf32, #tpu.memory_space<vmem>>, %arg2: memref<1x144xf32, #tpu.memory_space<vmem>>, %arg3: memref<1x144xf32, #tpu.memory_space<vmem>>, %arg4: memref<2x144xf32, #tpu.memory_space<vmem>>) attributes {dimension_semantics = [#tpu.dimension_semantics<arbitrary>], iteration_bounds = array<i64: 1>, scalar_prefetch = 0 : i64, scratch_operands = 0 : i64, tpu.core_type = #tpu.core_type<tc>, window_params = [{pipeline_mode = #tpu.pipeline_mode<synchronous>, transform_indices = @transform_0, window_bounds = array<i64: 2, 144>}, {pipeline_mode = #tpu.pipeline_mode<synchronous>, transform_indices = @transform_1, window_bounds = array<i64: 1, 144>}, {pipeline_mode = #tpu.pipeline_mode<synchronous>, transform_indices = @transform_2, window_bounds = array<i64: 1, 144>}, {pipeline_mode = #tpu.pipeline_mode<synchronous>, transform_indices = @transform_3, window_bounds = array<i64: 2, 144>}]} {
    %c0 = arith.constant 0 : index
    %c0_0 = arith.constant 0 : index
    %0 = vector.load %arg1[%c0, %c0_0] : memref<2x144xf32, #tpu.memory_space<vmem>>, vector<2x144xf32>
    %c0_1 = arith.constant 0 : index
    %c0_2 = arith.constant 0 : index
    %1 = vector.load %arg2[%c0_1, %c0_2] : memref<1x144xf32, #tpu.memory_space<vmem>>, vector<1x144xf32>
    %2 = vector.broadcast %1 : vector<1x144xf32> to vector<2x144xf32>
    %3 = arith.mulf %0, %2 : vector<2x144xf32>
    %c0_3 = arith.constant 0 : index
    %c0_4 = arith.constant 0 : index
    %4 = vector.load %arg3[%c0_3, %c0_4] : memref<1x144xf32, #tpu.memory_space<vmem>>, vector<1x144xf32>
    %5 = vector.broadcast %4 : vector<1x144xf32> to vector<2x144xf32>
    %6 = arith.addf %3, %5 : vector<2x144xf32>
    %cst = arith.constant 0.000000e+00 : f32
    %7 = vector.broadcast %cst : f32 to vector<2x144xf32>
    %8 = arith.maximumf %6, %7 : vector<2x144xf32>
    %c0_5 = arith.constant 0 : index
    %c0_6 = arith.constant 0 : index
    %9 = vector.load %arg4[%c0_5, %c0_6] : memref<2x144xf32, #tpu.memory_space<vmem>>, vector<2x144xf32>
    tpu.vector_store %arg4[%c0_5, %c0_6], %8 {strides = array<i32>} : memref<2x144xf32, #tpu.memory_space<vmem>>, vector<2x144xf32>,
    return
  }
  func.func @transform_0(%arg0: i32) -> (i32, i32) {
    %c0_i32 = arith.constant 0 : i32
    %c0_i32_0 = arith.constant 0 : i32
    %c0_i32_1 = arith.constant 0 : i32
    return %c0_i32, %c0_i32_0 : i32, i32
  }
  func.func @transform_1(%arg0: i32) -> (i32, i32) {
    %c0_i32 = arith.constant 0 : i32
    %c0_i32_0 = arith.constant 0 : i32
    %c0_i32_1 = arith.constant 0 : i32
    return %c0_i32, %c0_i32_0 : i32, i32
  }
  func.func @transform_2(%arg0: i32) -> (i32, i32) {
    %c0_i32 = arith.constant 0 : i32
    %c0_i32_0 = arith.constant 0 : i32
    %c0_i32_1 = arith.constant 0 : i32
    return %c0_i32, %c0_i32_0 : i32, i32
  }
  func.func @transform_3(%arg0: i32) -> (i32, i32) {
    %c0_i32 = arith.constant 0 : i32
    %c0_i32_0 = arith.constant 0 : i32
    %c0_i32_1 = arith.constant 0 : i32
    return %c0_i32, %c0_i32_0 : i32, i32
  }
}

module attributes {stable_mosaic.version = 11 : i64} {
  func.func @_matmul_kernel(%arg0: i32, %arg1: memref<32x144xbf16, #tpu.memory_space<vmem>>, %arg2: memref<144x16xbf16, #tpu.memory_space<vmem>>, %arg3: memref<32x16xf32, #tpu.memory_space<vmem>>) attributes {dimension_semantics = [#tpu.dimension_semantics<parallel>], iteration_bounds = array<i64: 1>, scalar_prefetch = 0 : i64, scratch_operands = 0 : i64, tpu.core_type = #tpu.core_type<tc>, window_params = [{transform_indices = @transform_0, window_bounds = array<i64: 32, 144>}, {pipeline_mode = #tpu.pipeline_mode<synchronous>, transform_indices = @transform_1, window_bounds = array<i64: 144, 16>}, {transform_indices = @transform_2, window_bounds = array<i64: 32, 16>}]} {
    %c0 = arith.constant 0 : index
    %c0_0 = arith.constant 0 : index
    %0 = vector.load %arg1[%c0, %c0_0] : memref<32x144xbf16, #tpu.memory_space<vmem>>, vector<32x144xbf16>
    %c0_1 = arith.constant 0 : index
    %c0_2 = arith.constant 0 : index
    %1 = vector.load %arg2[%c0_1, %c0_2] : memref<144x16xbf16, #tpu.memory_space<vmem>>, vector<144x16xbf16>
    %cst = arith.constant dense<0.000000e+00> : vector<32x16xf32>
    %2 = tpu.matmul %0, %1, %cst {dimension_numbers = #tpu.dot_dimension_numbers<[1], [0], [0], [1], [0, 0, 1, 1], [], []>} : vector<32x144xbf16>, vector<144x16xbf16>, vector<32x16xf32> -> vector<32x16xf32>
    %c0_3 = arith.constant 0 : index
    %c0_4 = arith.constant 0 : index
    %3 = vector.load %arg3[%c0_3, %c0_4] : memref<32x16xf32, #tpu.memory_space<vmem>>, vector<32x16xf32>
    tpu.vector_store %arg3[%c0_3, %c0_4], %2 {strides = array<i32>} : memref<32x16xf32, #tpu.memory_space<vmem>>, vector<32x16xf32>,
    return
  }
  func.func @transform_0(%arg0: i32) -> (i32, i32) {
    %c0_i32 = arith.constant 0 : i32
    %c0_i32_0 = arith.constant 0 : i32
    return %arg0, %c0_i32 : i32, i32
  }
  func.func @transform_1(%arg0: i32) -> (i32, i32) {
    %c0_i32 = arith.constant 0 : i32
    %c0_i32_0 = arith.constant 0 : i32
    %c0_i32_1 = arith.constant 0 : i32
    return %c0_i32, %c0_i32_0 : i32, i32
  }
  func.func @transform_2(%arg0: i32) -> (i32, i32) {
    %c0_i32 = arith.constant 0 : i32
    %c0_i32_0 = arith.constant 0 : i32
    return %arg0, %c0_i32 : i32, i32
  }
}

module attributes {stable_mosaic.version = 11 : i64} {
  func.func @_matmul_kernel(%arg0: i32, %arg1: memref<32x8xbf16, #tpu.memory_space<vmem>>, %arg2: memref<8x16xbf16, #tpu.memory_space<vmem>>, %arg3: memref<32x16xf32, #tpu.memory_space<vmem>>) attributes {dimension_semantics = [#tpu.dimension_semantics<parallel>], iteration_bounds = array<i64: 1>, scalar_prefetch = 0 : i64, scratch_operands = 0 : i64, tpu.core_type = #tpu.core_type<tc>, window_params = [{transform_indices = @transform_0, window_bounds = array<i64: 32, 8>}, {pipeline_mode = #tpu.pipeline_mode<synchronous>, transform_indices = @transform_1, window_bounds = array<i64: 8, 16>}, {transform_indices = @transform_2, window_bounds = array<i64: 32, 16>}]} {
    %c0 = arith.constant 0 : index
    %c0_0 = arith.constant 0 : index
    %0 = vector.load %arg1[%c0, %c0_0] : memref<32x8xbf16, #tpu.memory_space<vmem>>, vector<32x8xbf16>
    %c0_1 = arith.constant 0 : index
    %c0_2 = arith.constant 0 : index
    %1 = vector.load %arg2[%c0_1, %c0_2] : memref<8x16xbf16, #tpu.memory_space<vmem>>, vector<8x16xbf16>
    %cst = arith.constant dense<0.000000e+00> : vector<32x16xf32>
    %2 = tpu.matmul %0, %1, %cst {dimension_numbers = #tpu.dot_dimension_numbers<[1], [0], [0], [1], [0, 0, 1, 1], [], []>} : vector<32x8xbf16>, vector<8x16xbf16>, vector<32x16xf32> -> vector<32x16xf32>
    %c0_3 = arith.constant 0 : index
    %c0_4 = arith.constant 0 : index
    %3 = vector.load %arg3[%c0_3, %c0_4] : memref<32x16xf32, #tpu.memory_space<vmem>>, vector<32x16xf32>
    tpu.vector_store %arg3[%c0_3, %c0_4], %2 {strides = array<i32>} : memref<32x16xf32, #tpu.memory_space<vmem>>, vector<32x16xf32>,
    return
  }
  func.func @transform_0(%arg0: i32) -> (i32, i32) {
    %c0_i32 = arith.constant 0 : i32
    %c0_i32_0 = arith.constant 0 : i32
    return %arg0, %c0_i32 : i32, i32
  }
  func.func @transform_1(%arg0: i32) -> (i32, i32) {
    %c0_i32 = arith.constant 0 : i32
    %c0_i32_0 = arith.constant 0 : i32
    %c0_i32_1 = arith.constant 0 : i32
    return %c0_i32, %c0_i32_0 : i32, i32
  }
  func.func @transform_2(%arg0: i32) -> (i32, i32) {
    %c0_i32 = arith.constant 0 : i32
    %c0_i32_0 = arith.constant 0 : i32
    return %arg0, %c0_i32 : i32, i32
  }
}

module attributes {stable_mosaic.version = 11 : i64} {
  func.func @_bn_add_relu_kernel(%arg0: i32, %arg1: memref<2x144xf32, #tpu.memory_space<vmem>>, %arg2: memref<1x144xf32, #tpu.memory_space<vmem>>, %arg3: memref<1x144xf32, #tpu.memory_space<vmem>>, %arg4: memref<2x144xf32, #tpu.memory_space<vmem>>, %arg5: memref<1x144xf32, #tpu.memory_space<vmem>>, %arg6: memref<1x144xf32, #tpu.memory_space<vmem>>, %arg7: memref<2x144xf32, #tpu.memory_space<vmem>>) attributes {dimension_semantics = [#tpu.dimension_semantics<arbitrary>], iteration_bounds = array<i64: 1>, scalar_prefetch = 0 : i64, scratch_operands = 0 : i64, tpu.core_type = #tpu.core_type<tc>, window_params = [{pipeline_mode = #tpu.pipeline_mode<synchronous>, transform_indices = @transform_0, window_bounds = array<i64: 2, 144>}, {pipeline_mode = #tpu.pipeline_mode<synchronous>, transform_indices = @transform_1, window_bounds = array<i64: 1, 144>}, {pipeline_mode = #tpu.pipeline_mode<synchronous>, transform_indices = @transform_2, window_bounds = array<i64: 1, 144>}, {pipeline_mode = #tpu.pipeline_mode<synchronous>, transform_indices = @transform_3, window_bounds = array<i64: 2, 144>}, {pipeline_mode = #tpu.pipeline_mode<synchronous>, transform_indices = @transform_4, window_bounds = array<i64: 1, 144>}, {pipeline_mode = #tpu.pipeline_mode<synchronous>, transform_indices = @transform_5, window_bounds = array<i64: 1, 144>}, {pipeline_mode = #tpu.pipeline_mode<synchronous>, transform_indices = @transform_6, window_bounds = array<i64: 2, 144>}]} {
    %c0 = arith.constant 0 : index
    %c0_0 = arith.constant 0 : index
    %0 = vector.load %arg1[%c0, %c0_0] : memref<2x144xf32, #tpu.memory_space<vmem>>, vector<2x144xf32>
    %c0_1 = arith.constant 0 : index
    %c0_2 = arith.constant 0 : index
    %1 = vector.load %arg2[%c0_1, %c0_2] : memref<1x144xf32, #tpu.memory_space<vmem>>, vector<1x144xf32>
    %2 = vector.broadcast %1 : vector<1x144xf32> to vector<2x144xf32>
    %3 = arith.mulf %0, %2 : vector<2x144xf32>
    %c0_3 = arith.constant 0 : index
    %c0_4 = arith.constant 0 : index
    %4 = vector.load %arg3[%c0_3, %c0_4] : memref<1x144xf32, #tpu.memory_space<vmem>>, vector<1x144xf32>
    %5 = vector.broadcast %4 : vector<1x144xf32> to vector<2x144xf32>
    %6 = arith.addf %3, %5 : vector<2x144xf32>
    %c0_5 = arith.constant 0 : index
    %c0_6 = arith.constant 0 : index
    %7 = vector.load %arg4[%c0_5, %c0_6] : memref<2x144xf32, #tpu.memory_space<vmem>>, vector<2x144xf32>
    %c0_7 = arith.constant 0 : index
    %c0_8 = arith.constant 0 : index
    %8 = vector.load %arg5[%c0_7, %c0_8] : memref<1x144xf32, #tpu.memory_space<vmem>>, vector<1x144xf32>
    %9 = vector.broadcast %8 : vector<1x144xf32> to vector<2x144xf32>
    %10 = arith.mulf %7, %9 : vector<2x144xf32>
    %c0_9 = arith.constant 0 : index
    %c0_10 = arith.constant 0 : index
    %11 = vector.load %arg6[%c0_9, %c0_10] : memref<1x144xf32, #tpu.memory_space<vmem>>, vector<1x144xf32>
    %12 = vector.broadcast %11 : vector<1x144xf32> to vector<2x144xf32>
    %13 = arith.addf %10, %12 : vector<2x144xf32>
    %14 = arith.addf %6, %13 : vector<2x144xf32>
    %cst = arith.constant 0.000000e+00 : f32
    %15 = vector.broadcast %cst : f32 to vector<2x144xf32>
    %16 = arith.maximumf %14, %15 : vector<2x144xf32>
    %c0_11 = arith.constant 0 : index
    %c0_12 = arith.constant 0 : index
    %17 = vector.load %arg7[%c0_11, %c0_12] : memref<2x144xf32, #tpu.memory_space<vmem>>, vector<2x144xf32>
    tpu.vector_store %arg7[%c0_11, %c0_12], %16 {strides = array<i32>} : memref<2x144xf32, #tpu.memory_space<vmem>>, vector<2x144xf32>,
    return
  }
  func.func @transform_0(%arg0: i32) -> (i32, i32) {
    %c0_i32 = arith.constant 0 : i32
    %c0_i32_0 = arith.constant 0 : i32
    %c0_i32_1 = arith.constant 0 : i32
    return %c0_i32, %c0_i32_0 : i32, i32
  }
  func.func @transform_1(%arg0: i32) -> (i32, i32) {
    %c0_i32 = arith.constant 0 : i32
    %c0_i32_0 = arith.constant 0 : i32
    %c0_i32_1 = arith.constant 0 : i32
    return %c0_i32, %c0_i32_0 : i32, i32
  }
  func.func @transform_2(%arg0: i32) -> (i32, i32) {
    %c0_i32 = arith.constant 0 : i32
    %c0_i32_0 = arith.constant 0 : i32
    %c0_i32_1 = arith.constant 0 : i32
    return %c0_i32, %c0_i32_0 : i32, i32
  }
  func.func @transform_3(%arg0: i32) -> (i32, i32) {
    %c0_i32 = arith.constant 0 : i32
    %c0_i32_0 = arith.constant 0 : i32
    %c0_i32_1 = arith.constant 0 : i32
    return %c0_i32, %c0_i32_0 : i32, i32
  }
  func.func @transform_4(%arg0: i32) -> (i32, i32) {
    %c0_i32 = arith.constant 0 : i32
    %c0_i32_0 = arith.constant 0 : i32
    %c0_i32_1 = arith.constant 0 : i32
    return %c0_i32, %c0_i32_0 : i32, i32
  }
  func.func @transform_5(%arg0: i32) -> (i32, i32) {
    %c0_i32 = arith.constant 0 : i32
    %c0_i32_0 = arith.constant 0 : i32
    %c0_i32_1 = arith.constant 0 : i32
    return %c0_i32, %c0_i32_0 : i32, i32
  }
  func.func @transform_6(%arg0: i32) -> (i32, i32) {
    %c0_i32 = arith.constant 0 : i32
    %c0_i32_0 = arith.constant 0 : i32
    %c0_i32_1 = arith.constant 0 : i32
    return %c0_i32, %c0_i32_0 : i32, i32
  }
}

</mosaic_0001>

<llo_original>
// kernel: resnet_forward.12
$region0: #{resnet_forward.12}
  #allocation0 [shape = 'u32[]', space=smem, size = 0x4, offset = 0x4, fixed_abs, tag = 'smem constant byte address 0x4 - core index']
  #allocation1 [shape = 'u32[144,128]{1,0:T(1,128)}', space=vmem, size = 0x12000, scoped, tag = 'internal scratch']
  %s0 = inlined_call_operand.vmem [shape: bf16[352,147], index: 0, kind: input, shape index: {}]
  %s1 = inlined_call_operand.vmem [shape: bf16[147,8], index: 1, kind: input, shape index: {}]
  %s2 = inlined_call_operand.vmem [shape: f32[352,8], index: 2, kind: output, shape index: {}]
  %s3 = sld [smem:[#allocation0]]
  $region18: #{resnet_forward.12} parent=0
    _
  %s5 = ssub.s32 1, %s3
  %s6 = scalar_select 0, %s5, %s3
  // Predicated region
  $region2: #{resnet_forward.12} parent=0 // pred_check
    _
  $region3: #{resnet_forward.12} parent=0 // pred_check_branch
    %8 = sbr.rel (0) target = $region5
  $region4: #{resnet_forward.12} parent=0 // pred_region
    _
  $region5: #{resnet_forward.12} parent=0 // pred_fallthru
    _
  // Predicated region
  $region6: #{resnet_forward.12} parent=0 // pred_check
    _
  $region7: #{resnet_forward.12} parent=0 // pred_check_branch
    %10 = sbr.rel (0) target = $region9
  $region8: #{resnet_forward.12} parent=0 // pred_region
    _
  $region9: #{resnet_forward.12} parent=0 // pred_fallthru
    _
  %v12 = vld [vmem:[%s0] sm:$0xff]
  %v13 = vld [vmem:[%s0 + $0x8] sm:$0xff]
  %v14 = vld [vmem:[%s0 + $0x10] sm:$0xff]
  %v15 = vld [vmem:[%s0 + $0x18] sm:$0xff]
  %v16 = vld [vmem:[%s0 + $0x20] sm:$0xff]
  %v17 = vld [vmem:[%s0 + $0x28] sm:$0xff]
  %v18 = vld [vmem:[%s0 + $0x30] sm:$0xff]
  %v19 = vld [vmem:[%s0 + $0x38] sm:$0xff]
  %v20 = vld [vmem:[%s0 + $0x40] sm:$0xff]
  %v21 = vld [vmem:[%s0 + $0x48] sm:$0xff]
  %v22 = vld [vmem:[%s0 + $0x50] sm:$0xff]
  %v23 = vld [vmem:[%s0 + $0x58] sm:$0xff]
  %v24 = vld [vmem:[%s0 + $0x60] sm:$0xff]
  %v25 = vld [vmem:[%s0 + $0x68] sm:$0xff]
  %v26 = vld [vmem:[%s0 + $0x70] sm:$0xff]
  %v27 = vld [vmem:[%s0 + $0x78] sm:$0xff]
  %v28 = vld [vmem:[%s0 + $0x80] sm:$0xff]
  %v29 = vld [vmem:[%s0 + $0x88] sm:$0xff]
  %v30 = vld [vmem:[%s0 + $0x90] sm:$0xff]
  %v31 = vld [vmem:[%s0 + $0x98] sm:$0xff]
  %v32 = vld [vmem:[%s0 + $0xa0] sm:$0xff]
  %v33 = vld [vmem:[%s0 + $0xa8] sm:$0xff]
  %v34 = vld [vmem:[%s0 + $0xb0] sm:$0xff]
  %v35 = vld [vmem:[%s0 + $0xb8] sm:$0xff]
  %v36 = vld [vmem:[%s0 + $0xc0] sm:$0xff]
  %v37 = vld [vmem:[%s0 + $0xc8] sm:$0xff]
  %v38 = vld [vmem:[%s0 + $0xd0] sm:$0xff]
  %v39 = vld [vmem:[%s0 + $0xd8] sm:$0xff]
  %v40 = vld [vmem:[%s0 + $0xe0] sm:$0xff]
  %v41 = vld [vmem:[%s0 + $0xe8] sm:$0xff]
  %v42 = vld [vmem:[%s0 + $0xf0] sm:$0xff]
  %v43 = vld [vmem:[%s0 + $0xf8] sm:$0xff]
  %v44 = vld [vmem:[%s0 + $0x100] sm:$0xff]
  %v45 = vld [vmem:[%s0 + $0x108] sm:$0xff]
  %v46 = vld [vmem:[%s0 + $0x110] sm:$0xff]
  %v47 = vld [vmem:[%s0 + $0x118] sm:$0xff]
  %v48 = vld [vmem:[%s0 + $0x120] sm:$0xff]
  %v49 = vld [vmem:[%s0 + $0x128] sm:$0xff]
  %v50 = vld [vmem:[%s0 + $0x130] sm:$0xff]
  %v51 = vld [vmem:[%s0 + $0x138] sm:$0xff]
  %v52 = vld [vmem:[%s0 + $0x140] sm:$0xff]
  %v53 = vld [vmem:[%s0 + $0x148] sm:$0xff]
  %v54 = vld [vmem:[%s0 + $0x150] sm:$0xff]
  %v55 = vld [vmem:[%s0 + $0x158] sm:$0xff]
  %v56 = vld [vmem:[%s1] sm:$0xf]
  %v57 = vld [vmem:[%s1 + $0x4] sm:$0xf]
  %v58 = vld [vmem:[%s1 + $0x8] sm:$0xf]
  %v59 = vld [vmem:[%s1 + $0xc] sm:$0xf]
  %v60 = vld [vmem:[%s1 + $0x10] sm:$0xf]
  %v61 = vld [vmem:[%s1 + $0x14] sm:$0xf]
  %v62 = vld [vmem:[%s1 + $0x18] sm:$0xf]
  %v63 = vld [vmem:[%s1 + $0x1c] sm:$0xf]
  %v64 = vld [vmem:[%s1 + $0x20] sm:$0xf]
  %v65 = vld [vmem:[%s1 + $0x24] sm:$0xf]
  %v66 = vld [vmem:[%s1 + $0x28] sm:$0xf]
  %v67 = vld [vmem:[%s1 + $0x2c] sm:$0xf]
  %v68 = vld [vmem:[%s1 + $0x30] sm:$0xf]
  %v69 = vld [vmem:[%s1 + $0x34] sm:$0xf]
  %v70 = vld [vmem:[%s1 + $0x38] sm:$0xf]
  %v71 = vld [vmem:[%s1 + $0x3c] sm:$0xf]
  %v72 = vld [vmem:[%s1 + $0x40] sm:$0xf]
  %v73 = vld [vmem:[%s1 + $0x44] sm:$0xf]
  %v74 = vld [vmem:[%s1 + $0x48] sm:$0x3]
  %v119 = vunpack.c.l.b16 %v12
  %v120 = vunpack.c.h.b16 %v12
  %v121 = vunpack.c.l.b16 %v13
  %v122 = vunpack.c.h.b16 %v13
  %v123 = vunpack.c.l.b16 %v14
  %v124 = vunpack.c.h.b16 %v14
  %v125 = vunpack.c.l.b16 %v15
  %v126 = vunpack.c.h.b16 %v15
  %v127 = vunpack.c.l.b16 %v16
  %v128 = vunpack.c.h.b16 %v16
  %v129 = vunpack.c.l.b16 %v17
  %v130 = vunpack.c.h.b16 %v17
  %v131 = vunpack.c.l.b16 %v18
  %v132 = vunpack.c.h.b16 %v18
  %v133 = vunpack.c.l.b16 %v19
  %v134 = vunpack.c.h.b16 %v19
  %v135 = vunpack.c.l.b16 %v20
  %v136 = vunpack.c.h.b16 %v20
  %v137 = vunpack.c.l.b16 %v21
  %v138 = vunpack.c.h.b16 %v21
  %v139 = vunpack.c.l.b16 %v22
  %v140 = vunpack.c.h.b16 %v22
  %v141 = vunpack.c.l.b16 %v23
  %v142 = vunpack.c.h.b16 %v23
  %v143 = vunpack.c.l.b16 %v24
  %v144 = vunpack.c.h.b16 %v24
  %v145 = vunpack.c.l.b16 %v25
  %v146 = vunpack.c.h.b16 %v25
  %v147 = vunpack.c.l.b16 %v26
  %v148 = vunpack.c.h.b16 %v26
  %v149 = vunpack.c.l.b16 %v27
  %v150 = vunpack.c.h.b16 %v27
  %v151 = vunpack.c.l.b16 %v28
  %v152 = vunpack.c.h.b16 %v28
  %v153 = vunpack.c.l.b16 %v29
  %v154 = vunpack.c.h.b16 %v29
  %v155 = vunpack.c.l.b16 %v30
  %v156 = vunpack.c.h.b16 %v30
  %v157 = vunpack.c.l.b16 %v31
  %v158 = vunpack.c.h.b16 %v31
  %v159 = vunpack.c.l.b16 %v32
  %v160 = vunpack.c.h.b16 %v32
  %v161 = vunpack.c.l.b16 %v33
  %v162 = vunpack.c.h.b16 %v33
  %v163 = vunpack.c.l.b16 %v34
  %v164 = vunpack.c.h.b16 %v34
  %v165 = vunpack.c.l.b16 %v35
  %v166 = vunpack.c.h.b16 %v35
  %v167 = vunpack.c.l.b16 %v36
  %v168 = vunpack.c.h.b16 %v36
  %v169 = vunpack.c.l.b16 %v37
  %v170 = vunpack.c.h.b16 %v37
  %v171 = vunpack.c.l.b16 %v38
  %v172 = vunpack.c.h.b16 %v38
  %v173 = vunpack.c.l.b16 %v39
  %v174 = vunpack.c.h.b16 %v39
  %v175 = vunpack.c.l.b16 %v40
  %v176 = vunpack.c.h.b16 %v40
  %v177 = vunpack.c.l.b16 %v41
  %v178 = vunpack.c.h.b16 %v41
  %v179 = vunpack.c.l.b16 %v42
  %v180 = vunpack.c.h.b16 %v42
  %v181 = vunpack.c.l.b16 %v43
  %v182 = vunpack.c.h.b16 %v43
  %v183 = vunpack.c.l.b16 %v44
  %v184 = vunpack.c.h.b16 %v44
  %v185 = vunpack.c.l.b16 %v45
  %v186 = vunpack.c.h.b16 %v45
  %v187 = vunpack.c.l.b16 %v46
  %v188 = vunpack.c.h.b16 %v46
  %v189 = vunpack.c.l.b16 %v47
  %v190 = vunpack.c.h.b16 %v47
  %v191 = vunpack.c.l.b16 %v48
  %v192 = vunpack.c.h.b16 %v48
  %v193 = vunpack.c.l.b16 %v49
  %v194 = vunpack.c.h.b16 %v49
  %v195 = vunpack.c.l.b16 %v50
  %v196 = vunpack.c.h.b16 %v50
  %v197 = vunpack.c.l.b16 %v51
  %v198 = vunpack.c.h.b16 %v51
  %v199 = vunpack.c.l.b16 %v52
  %v200 = vunpack.c.h.b16 %v52
  %v201 = vunpack.c.l.b16 %v53
  %v202 = vunpack.c.h.b16 %v53
  %v203 = vunpack.c.l.b16 %v54
  %v204 = vunpack.c.h.b16 %v54
  %v205 = vunpack.c.l.b16 %v55
  %v206 = vunpack.c.h.b16 %v55
  %v207 = vpack.c.b16 %v121, %v119
  %v208 = vpack.c.b16 %v122, %v120
  %v209 = vpack.c.b16 %v125, %v123
  %v210 = vpack.c.b16 %v126, %v124
  %v211 = vpack.c.b16 %v129, %v127
  %v212 = vpack.c.b16 %v130, %v128
  %v213 = vpack.c.b16 %v133, %v131
  %v214 = vpack.c.b16 %v134, %v132
  %v215 = vpack.c.b16 %v137, %v135
  %v216 = vpack.c.b16 %v138, %v136
  %v217 = vpack.c.b16 %v141, %v139
  %v218 = vpack.c.b16 %v142, %v140
  %v219 = vpack.c.b16 %v145, %v143
  %v220 = vpack.c.b16 %v146, %v144
  %v221 = vpack.c.b16 %v149, %v147
  %v222 = vpack.c.b16 %v150, %v148
  %v223 = vpack.c.b16 %v153, %v151
  %v224 = vpack.c.b16 %v154, %v152
  %v225 = vpack.c.b16 %v157, %v155
  %v226 = vpack.c.b16 %v158, %v156
  %v227 = vpack.c.b16 %v161, %v159
  %v228 = vpack.c.b16 %v162, %v160
  %v229 = vpack.c.b16 %v165, %v163
  %v230 = vpack.c.b16 %v166, %v164
  %v231 = vpack.c.b16 %v169, %v167
  %v232 = vpack.c.b16 %v170, %v168
  %v233 = vpack.c.b16 %v173, %v171
  %v234 = vpack.c.b16 %v174, %v172
  %v235 = vpack.c.b16 %v177, %v175
  %v236 = vpack.c.b16 %v178, %v176
  %v237 = vpack.c.b16 %v181, %v179
  %v238 = vpack.c.b16 %v182, %v180
  %v239 = vpack.c.b16 %v185, %v183
  %v240 = vpack.c.b16 %v186, %v184
  %v241 = vpack.c.b16 %v189, %v187
  %v242 = vpack.c.b16 %v190, %v188
  %v243 = vpack.c.b16 %v193, %v191
  %v244 = vpack.c.b16 %v194, %v192
  %v245 = vpack.c.b16 %v197, %v195
  %v246 = vpack.c.b16 %v198, %v196
  %v247 = vpack.c.b16 %v201, %v199
  %v248 = vpack.c.b16 %v202, %v200
  %v249 = vpack.c.b16 %v205, %v203
  %v250 = vpack.c.b16 %v206, %v204
  %v292 = vunpack.c.l.b16 %v56
  %v293 = vunpack.c.l.b16 %v57
  %v294 = vunpack.c.l.b16 %v58
  %v295 = vunpack.c.l.b16 %v59
  %v296 = vunpack.c.l.b16 %v60
  %v297 = vunpack.c.l.b16 %v61
  %v298 = vunpack.c.l.b16 %v62
  %v299 = vunpack.c.l.b16 %v63
  %v300 = vunpack.c.l.b16 %v64
  %v301 = vunpack.c.l.b16 %v65
  %v302 = vunpack.c.l.b16 %v66
  %v303 = vunpack.c.l.b16 %v67
  %v304 = vunpack.c.l.b16 %v68
  %v305 = vunpack.c.l.b16 %v69
  %v306 = vunpack.c.l.b16 %v70
  %v307 = vunpack.c.l.b16 %v71
  %v308 = vunpack.c.l.b16 %v72
  %v309 = vunpack.c.l.b16 %v73
  %v310 = vunpack.c.l.b16 %v74
  %v311 = vpack.c.b16 %v293, %v292
  %v312 = vpack.c.b16 %v295, %v294
  %v313 = vpack.c.b16 %v297, %v296
  %v314 = vpack.c.b16 %v299, %v298
  %v315 = vpack.c.b16 %v301, %v300
  %v316 = vpack.c.b16 %v303, %v302
  %v317 = vpack.c.b16 %v305, %v304
  %v318 = vpack.c.b16 %v307, %v306
  %v319 = vpack.c.b16 %v309, %v308
  %v320 = vpack.c.b16 %v310, %v310
  %vm330 = vcmask 154624
  %v332 = vsel %vm330, %v208, 0
  %v335 = vsel %vm330, %v210, 0
  %v338 = vsel %vm330, %v212, 0
  %v341 = vsel %vm330, %v214, 0
  %v344 = vsel %vm330, %v216, 0
  %v347 = vsel %vm330, %v218, 0
  %v350 = vsel %vm330, %v220, 0
  %v353 = vsel %vm330, %v222, 0
  %v356 = vsel %vm330, %v224, 0
  %v359 = vsel %vm330, %v226, 0
  %v362 = vsel %vm330, %v228, 0
  %v365 = vsel %vm330, %v230, 0
  %v368 = vsel %vm330, %v232, 0
  %v371 = vsel %vm330, %v234, 0
  %v374 = vsel %vm330, %v236, 0
  %v377 = vsel %vm330, %v238, 0
  %v380 = vsel %vm330, %v240, 0
  %v383 = vsel %vm330, %v242, 0
  %v386 = vsel %vm330, %v244, 0
  %v389 = vsel %vm330, %v246, 0
  %v392 = vsel %vm330, %v248, 0
  %v395 = vsel %vm330, %v250, 0
  %vm397 = vcmask 1040384
  %vm398 = vcmask 1041408
  %v399 = vsel %vm397, 4294967295, 65535
  %v400 = vsel %vm398, %v399, 0
  %v402 = vand.u32 %v320, %v400
  %404 = vmatprep.subr.bf16.mxu0 0
  %405 = vmatpush1.bf16.msra.mxu0 %v311
  %406 = vmatprep.subr.bf16.mxu0 0
  %407 = vmatpush1.bf16.msra.mxu0 %v312
  %408 = vmatprep.subr.bf16.mxu0 0
  %409 = vmatpush1.bf16.msra.mxu0 %v313
  %410 = vmatprep.subr.bf16.mxu0 0
  %411 = vmatpush1.bf16.msra.mxu0 %v314
  %412 = vmatprep.subr.bf16.mxu0 0
  %413 = vmatpush1.bf16.msra.mxu0 %v315
  %414 = vmatprep.subr.bf16.mxu0 0
  %415 = vmatpush1.bf16.msra.mxu0 %v316
  %416 = vmatprep.subr.bf16.mxu0 0
  %417 = vmatpush1.bf16.msra.mxu0 %v317
  %418 = vmatprep.subr.bf16.mxu0 0
  %419 = vmatpush1.bf16.msra.mxu0 %v318
  %420 = vmatprep.subr.bf16.mxu0 0
  %421 = vmatpush1.bf16.msra.mxu0 %v319
  %422 = vmatprep.subr.bf16.mxu0 0
  %423 = vmatpush1.bf16.msra.mxu0 %v402
  %424 = vmatprep.subr.bf16.mxu0 0
  %425 = vmatpush1.bf16.msra.mxu0 0
  %426 = vmatprep.subr.bf16.mxu0 0
  %427 = vmatpush1.bf16.msra.mxu0 0
  %428 = vmatprep.subr.bf16.mxu0 0
  %429 = vmatpush1.bf16.msra.mxu0 0
  %430 = vmatprep.subr.bf16.mxu0 0
  %431 = vmatpush1.bf16.msra.mxu0 0
  %432 = vmatprep.subr.bf16.mxu0 0
  %433 = vmatpush1.bf16.msra.mxu0 0
  %434 = vmatprep.subr.bf16.mxu0 0
  %435 = vmatpush1.bf16.msra.mxu0 0
  %436 = vmatprep.mubr.bf16.mxu0 %v332
  %437 = vmatmul.mubr.bf16.gmra.mrb[0].mxu0 %v207
  %v438 = vpop.f32.mrb[0].mxu0
  %v439 = vadd.f32 0.0, %v438
  %v440 = vpop.f32.mrb[0].mxu0
  %v441 = vpop.f32.mrb[0].mxu0
  %v442 = vadd.f32 0.0, %v441
  %v443 = vpop.f32.mrb[0].mxu0
  %444 = vmatprep.mubr.bf16.mxu0 %v335
  %445 = vmatmul.mubr.bf16.gmra.mrb[0].mxu0 %v209
  %v446 = vpop.f32.mrb[0].mxu0
  %v447 = vadd.f32 0.0, %v446
  %v448 = vpop.f32.mrb[0].mxu0
  %v449 = vpop.f32.mrb[0].mxu0
  %v450 = vadd.f32 0.0, %v449
  %v451 = vpop.f32.mrb[0].mxu0
  %452 = vmatprep.mubr.bf16.mxu0 %v338
  %453 = vmatmul.mubr.bf16.gmra.mrb[0].mxu0 %v211
  %v454 = vpop.f32.mrb[0].mxu0
  %v455 = vadd.f32 0.0, %v454
  %v456 = vpop.f32.mrb[0].mxu0
  %v457 = vpop.f32.mrb[0].mxu0
  %v458 = vadd.f32 0.0, %v457
  %v459 = vpop.f32.mrb[0].mxu0
  %460 = vmatprep.mubr.bf16.mxu0 %v341
  %461 = vmatmul.mubr.bf16.gmra.mrb[0].mxu0 %v213
  %v462 = vpop.f32.mrb[0].mxu0
  %v463 = vadd.f32 0.0, %v462
  %v464 = vpop.f32.mrb[0].mxu0
  %v465 = vpop.f32.mrb[0].mxu0
  %v466 = vadd.f32 0.0, %v465
  %v467 = vpop.f32.mrb[0].mxu0
  %468 = vmatprep.mubr.bf16.mxu0 %v344
  %469 = vmatmul.mubr.bf16.gmra.mrb[0].mxu0 %v215
  %v470 = vpop.f32.mrb[0].mxu0
  %v471 = vadd.f32 0.0, %v470
  %v472 = vpop.f32.mrb[0].mxu0
  %v473 = vpop.f32.mrb[0].mxu0
  %v474 = vadd.f32 0.0, %v473
  %v475 = vpop.f32.mrb[0].mxu0
  %476 = vmatprep.mubr.bf16.mxu0 %v347
  %477 = vmatmul.mubr.bf16.gmra.mrb[0].mxu0 %v217
  %v478 = vpop.f32.mrb[0].mxu0
  %v479 = vadd.f32 0.0, %v478
  %v480 = vpop.f32.mrb[0].mxu0
  %v481 = vpop.f32.mrb[0].mxu0
  %v482 = vadd.f32 0.0, %v481
  %v483 = vpop.f32.mrb[0].mxu0
  %484 = vmatprep.mubr.bf16.mxu0 %v350
  %485 = vmatmul.mubr.bf16.gmra.mrb[0].mxu0 %v219
  %v486 = vpop.f32.mrb[0].mxu0
  %v487 = vadd.f32 0.0, %v486
  %v488 = vpop.f32.mrb[0].mxu0
  %v489 = vpop.f32.mrb[0].mxu0
  %v490 = vadd.f32 0.0, %v489
  %v491 = vpop.f32.mrb[0].mxu0
  %492 = vmatprep.mubr.bf16.mxu0 %v353
  %493 = vmatmul.mubr.bf16.gmra.mrb[0].mxu0 %v221
  %v494 = vpop.f32.mrb[0].mxu0
  %v495 = vadd.f32 0.0, %v494
  %v496 = vpop.f32.mrb[0].mxu0
  %v497 = vpop.f32.mrb[0].mxu0
  %v498 = vadd.f32 0.0, %v497
  %v499 = vpop.f32.mrb[0].mxu0
  %500 = vmatprep.mubr.bf16.mxu0 %v356
  %501 = vmatmul.mubr.bf16.gmra.mrb[0].mxu0 %v223
  %v502 = vpop.f32.mrb[0].mxu0
  %v503 = vadd.f32 0.0, %v502
  %v504 = vpop.f32.mrb[0].mxu0
  %v505 = vpop.f32.mrb[0].mxu0
  %v506 = vadd.f32 0.0, %v505
  %v507 = vpop.f32.mrb[0].mxu0
  %508 = vmatprep.mubr.bf16.mxu0 %v359
  %509 = vmatmul.mubr.bf16.gmra.mrb[0].mxu0 %v225
  %v510 = vpop.f32.mrb[0].mxu0
  %v511 = vadd.f32 0.0, %v510
  %v512 = vpop.f32.mrb[0].mxu0
  %v513 = vpop.f32.mrb[0].mxu0
  %v514 = vadd.f32 0.0, %v513
  %v515 = vpop.f32.mrb[0].mxu0
  %516 = vmatprep.mubr.bf16.mxu0 %v362
  %517 = vmatmul.mubr.bf16.gmra.mrb[0].mxu0 %v227
  %v518 = vpop.f32.mrb[0].mxu0
  %v519 = vadd.f32 0.0, %v518
  %v520 = vpop.f32.mrb[0].mxu0
  %v521 = vpop.f32.mrb[0].mxu0
  %v522 = vadd.f32 0.0, %v521
  %v523 = vpop.f32.mrb[0].mxu0
  %524 = vmatprep.mubr.bf16.mxu0 %v365
  %525 = vmatmul.mubr.bf16.gmra.mrb[0].mxu0 %v229
  %v526 = vpop.f32.mrb[0].mxu0
  %v527 = vadd.f32 0.0, %v526
  %v528 = vpop.f32.mrb[0].mxu0
  %v529 = vpop.f32.mrb[0].mxu0
  %v530 = vadd.f32 0.0, %v529
  %v531 = vpop.f32.mrb[0].mxu0
  %532 = vmatprep.mubr.bf16.mxu0 %v368
  %533 = vmatmul.mubr.bf16.gmra.mrb[0].mxu0 %v231
  %v534 = vpop.f32.mrb[0].mxu0
  %v535 = vadd.f32 0.0, %v534
  %v536 = vpop.f32.mrb[0].mxu0
  %v537 = vpop.f32.mrb[0].mxu0
  %v538 = vadd.f32 0.0, %v537
  %v539 = vpop.f32.mrb[0].mxu0
  %540 = vmatprep.mubr.bf16.mxu0 %v371
  %541 = vmatmul.mubr.bf16.gmra.mrb[0].mxu0 %v233
  %v542 = vpop.f32.mrb[0].mxu0
  %v543 = vadd.f32 0.0, %v542
  %v544 = vpop.f32.mrb[0].mxu0
  %v545 = vpop.f32.mrb[0].mxu0
  %v546 = vadd.f32 0.0, %v545
  %v547 = vpop.f32.mrb[0].mxu0
  %548 = vmatprep.mubr.bf16.mxu0 %v374
  %549 = vmatmul.mubr.bf16.gmra.mrb[0].mxu0 %v235
  %v550 = vpop.f32.mrb[0].mxu0
  %v551 = vadd.f32 0.0, %v550
  %v552 = vpop.f32.mrb[0].mxu0
  %v553 = vpop.f32.mrb[0].mxu0
  %v554 = vadd.f32 0.0, %v553
  %v555 = vpop.f32.mrb[0].mxu0
  %556 = vmatprep.mubr.bf16.mxu0 %v377
  %557 = vmatmul.mubr.bf16.gmra.mrb[0].mxu0 %v237
  %v558 = vpop.f32.mrb[0].mxu0
  %v559 = vadd.f32 0.0, %v558
  %v560 = vpop.f32.mrb[0].mxu0
  %v561 = vpop.f32.mrb[0].mxu0
  %v562 = vadd.f32 0.0, %v561
  %v563 = vpop.f32.mrb[0].mxu0
  %564 = vmatprep.mubr.bf16.mxu0 %v380
  %565 = vmatmul.mubr.bf16.gmra.mrb[0].mxu0 %v239
  %v566 = vpop.f32.mrb[0].mxu0
  %v567 = vadd.f32 0.0, %v566
  %v568 = vpop.f32.mrb[0].mxu0
  %v569 = vpop.f32.mrb[0].mxu0
  %v570 = vadd.f32 0.0, %v569
  %v571 = vpop.f32.mrb[0].mxu0
  %572 = vmatprep.mubr.bf16.mxu0 %v383
  %573 = vmatmul.mubr.bf16.gmra.mrb[0].mxu0 %v241
  %v574 = vpop.f32.mrb[0].mxu0
  %v575 = vadd.f32 0.0, %v574
  %v576 = vpop.f32.mrb[0].mxu0
  %v577 = vpop.f32.mrb[0].mxu0
  %v578 = vadd.f32 0.0, %v577
  %v579 = vpop.f32.mrb[0].mxu0
  %580 = vmatprep.mubr.bf16.mxu0 %v386
  %581 = vmatmul.mubr.bf16.gmra.mrb[0].mxu0 %v243
  %v582 = vpop.f32.mrb[0].mxu0
  %v583 = vadd.f32 0.0, %v582
  %v584 = vpop.f32.mrb[0].mxu0
  %v585 = vpop.f32.mrb[0].mxu0
  %v586 = vadd.f32 0.0, %v585
  %v587 = vpop.f32.mrb[0].mxu0
  %588 = vmatprep.mubr.bf16.mxu0 %v389
  %589 = vmatmul.mubr.bf16.gmra.mrb[0].mxu0 %v245
  %v590 = vpop.f32.mrb[0].mxu0
  %v591 = vadd.f32 0.0, %v590
  %v592 = vpop.f32.mrb[0].mxu0
  %v593 = vpop.f32.mrb[0].mxu0
  %v594 = vadd.f32 0.0, %v593
  %v595 = vpop.f32.mrb[0].mxu0
  %596 = vmatprep.mubr.bf16.mxu0 %v392
  %597 = vmatmul.mubr.bf16.gmra.mrb[0].mxu0 %v247
  %v598 = vpop.f32.mrb[0].mxu0
  %v599 = vadd.f32 0.0, %v598
  %v600 = vpop.f32.mrb[0].mxu0
  %v601 = vpop.f32.mrb[0].mxu0
  %v602 = vadd.f32 0.0, %v601
  %v603 = vpop.f32.mrb[0].mxu0
  %604 = vmatprep.mubr.bf16.mxu0 %v395
  %605 = vmatmul.mubr.bf16.gmra.mrb[0].mxu0 %v249
  %v606 = vpop.f32.mrb[0].mxu0
  %v607 = vadd.f32 0.0, %v606
  %v608 = vpop.f32.mrb[0].mxu0
  %v609 = vpop.f32.mrb[0].mxu0
  %v610 = vadd.f32 0.0, %v609
  %v611 = vpop.f32.mrb[0].mxu0
  %612 = vdwg.mxu0
  %vm613 = vcmask 64512
  %614 = vst.msk [vmem:[%s2] sm:$0xff] %vm613, %v439
  %615 = vst.msk [vmem:[%s2 + $0x8] sm:$0xff] %vm613, %v442
  %616 = vst.msk [vmem:[%s2 + $0x10] sm:$0xff] %vm613, %v447
  %617 = vst.msk [vmem:[%s2 + $0x18] sm:$0xff] %vm613, %v450
  %618 = vst.msk [vmem:[%s2 + $0x20] sm:$0xff] %vm613, %v455
  %619 = vst.msk [vmem:[%s2 + $0x28] sm:$0xff] %vm613, %v458
  %620 = vst.msk [vmem:[%s2 + $0x30] sm:$0xff] %vm613, %v463
  %621 = vst.msk [vmem:[%s2 + $0x38] sm:$0xff] %vm613, %v466
  %622 = vst.msk [vmem:[%s2 + $0x40] sm:$0xff] %vm613, %v471
  %623 = vst.msk [vmem:[%s2 + $0x48] sm:$0xff] %vm613, %v474
  %624 = vst.msk [vmem:[%s2 + $0x50] sm:$0xff] %vm613, %v479
  %625 = vst.msk [vmem:[%s2 + $0x58] sm:$0xff] %vm613, %v482
  %626 = vst.msk [vmem:[%s2 + $0x60] sm:$0xff] %vm613, %v487
  %627 = vst.msk [vmem:[%s2 + $0x68] sm:$0xff] %vm613, %v490
  %628 = vst.msk [vmem:[%s2 + $0x70] sm:$0xff] %vm613, %v495
  %629 = vst.msk [vmem:[%s2 + $0x78] sm:$0xff] %vm613, %v498
  %630 = vst.msk [vmem:[%s2 + $0x80] sm:$0xff] %vm613, %v503
  %631 = vst.msk [vmem:[%s2 + $0x88] sm:$0xff] %vm613, %v506
  %632 = vst.msk [vmem:[%s2 + $0x90] sm:$0xff] %vm613, %v511
  %633 = vst.msk [vmem:[%s2 + $0x98] sm:$0xff] %vm613, %v514
  %634 = vst.msk [vmem:[%s2 + $0xa0] sm:$0xff] %vm613, %v519
  %635 = vst.msk [vmem:[%s2 + $0xa8] sm:$0xff] %vm613, %v522
  %636 = vst.msk [vmem:[%s2 + $0xb0] sm:$0xff] %vm613, %v527
  %637 = vst.msk [vmem:[%s2 + $0xb8] sm:$0xff] %vm613, %v530
  %638 = vst.msk [vmem:[%s2 + $0xc0] sm:$0xff] %vm613, %v535
  %639 = vst.msk [vmem:[%s2 + $0xc8] sm:$0xff] %vm613, %v538
  %640 = vst.msk [vmem:[%s2 + $0xd0] sm:$0xff] %vm613, %v543
  %641 = vst.msk [vmem:[%s2 + $0xd8] sm:$0xff] %vm613, %v546
  %642 = vst.msk [vmem:[%s2 + $0xe0] sm:$0xff] %vm613, %v551
  %643 = vst.msk [vmem:[%s2 + $0xe8] sm:$0xff] %vm613, %v554
  %644 = vst.msk [vmem:[%s2 + $0xf0] sm:$0xff] %vm613, %v559
  %645 = vst.msk [vmem:[%s2 + $0xf8] sm:$0xff] %vm613, %v562
  %646 = vst.msk [vmem:[%s2 + $0x100] sm:$0xff] %vm613, %v567
  %647 = vst.msk [vmem:[%s2 + $0x108] sm:$0xff] %vm613, %v570
  %648 = vst.msk [vmem:[%s2 + $0x110] sm:$0xff] %vm613, %v575
  %649 = vst.msk [vmem:[%s2 + $0x118] sm:$0xff] %vm613, %v578
  %650 = vst.msk [vmem:[%s2 + $0x120] sm:$0xff] %vm613, %v583
  %651 = vst.msk [vmem:[%s2 + $0x128] sm:$0xff] %vm613, %v586
  %652 = vst.msk [vmem:[%s2 + $0x130] sm:$0xff] %vm613, %v591
  %653 = vst.msk [vmem:[%s2 + $0x138] sm:$0xff] %vm613, %v594
  %654 = vst.msk [vmem:[%s2 + $0x140] sm:$0xff] %vm613, %v599
  %655 = vst.msk [vmem:[%s2 + $0x148] sm:$0xff] %vm613, %v602
  %656 = vst.msk [vmem:[%s2 + $0x150] sm:$0xff] %vm613, %v607
  %657 = vst.msk [vmem:[%s2 + $0x158] sm:$0xff] %vm613, %v610
  // Predicated region
  $region10: #{resnet_forward.12} parent=0 // pred_check
    _
  $region11: #{resnet_forward.12} parent=0 // pred_check_branch
    %659 = sbr.rel (0) target = $region13
  $region12: #{resnet_forward.12} parent=0 // pred_region
    _
  $region13: #{resnet_forward.12} parent=0 // pred_fallthru
    _
  // Predicated region
  $region14: #{resnet_forward.12} parent=0 // pred_check
    _
  $region15: #{resnet_forward.12} parent=0 // pred_check_branch
    %661 = sbr.rel (0) target = $region17
  $region16: #{resnet_forward.12} parent=0 // pred_region
    _
  $region17: #{resnet_forward.12} parent=0 // pred_fallthru
    _

// kernel: tile.67
$region0: #{tile.67}
  #allocation0 [shape = 's32[1]{0}', space=sflag, size = 0x4, scoped, tag = 'scoped memory for tile.67']
  %s0 = inlined_call_operand.vmem [shape: f32[8], index: 0, kind: input, shape index: {}]
  %s1 = inlined_call_operand.vmem [shape: f32[36,8], index: 1, kind: output, shape index: {}]
  // Predicated region
  $region2: #{tile.67} parent=0 // pred_check
    _
  $region3: #{tile.67} parent=0 // pred_check_branch
    %3 = sbr.rel (0) target = $region5
  $region4: #{tile.67} parent=0 // pred_region
    _
  $region5: #{tile.67} parent=0 // pred_fallthru
    _
  %v4 = vld [vmem:[%s0] ss:$0 sm:$0xff]
  %5 = vst [vmem:[%s1] sm:$0xff] %v4
  %s6 = scalar_lea.vmem %s1, 8
  %7 = vst [vmem:[%s6] sm:$0xff] %v4
  %s8 = scalar_lea.vmem %s1, 16
  %9 = vst [vmem:[%s8] sm:$0xff] %v4
  %s10 = scalar_lea.vmem %s1, 24
  %11 = vst [vmem:[%s10] sm:$0xff] %v4
  %s12 = scalar_lea.vmem %s1, 32
  %13 = vst [vmem:[%s12] sm:$0xff] %v4

// kernel: tile.68
$region0: #{tile.68}
  %s0 = inlined_call_operand.vmem [shape: f32[36,8], index: 0, kind: input, shape index: {}]
  %s1 = inlined_call_operand.vmem [shape: f32[1,288], index: 1, kind: output, shape index: {}]
  $region1: #{tile.68} parent=0
    #allocation0 [shape = 'u8[12288]{0}', space=vmem, size = 0x3000, scoped, tag = 'scoped mem for output reshape']
    %s2 = smov 3
    %v3 = vld [vmem:[%s0] ss:$16 sm:%s2]
    %s4 = scalar_lea.vmem %s0, 30
    %v5 = vld [vmem:[%s4] sm:$0x4]
    %vm6 = vcmask 1042434
    %v7 = vsel %vm6, %v5, %v3
    %vm8 = vcmask 64512
    %9 = vst.msk [vmem:[#allocation0] ss:$8 sm:$0x7] %vm8, %v7
    %s10 = scalar_lea.vmem %s0, 15
    %s11 = smov 3
    %v12 = vld [vmem:[%s10] ss:$16 sm:%s11]
    %13 = vrot.lane.b32.xlu0 %v12, 120
    %v14 = vpop.permute.xlu0 %13
    %vm15 = vcmask 1048512
    %16 = vst.msk [vmem:[#allocation0] ss:$8 sm:$0x3] %vm15, %v14
    %s17 = scalar_lea.vmem %s0, 14
    %s18 = smov 3
    %v19 = vld [vmem:[%s17] ss:$16 sm:%s18]
    %20 = vrot.lane.b32.xlu0 %v19, 112
    %v21 = vpop.permute.xlu0 %20
    %vm22 = vcmask 982912
    %23 = vst.msk [vmem:[#allocation0] ss:$8 sm:$0x3] %vm22, %v21
    %s24 = scalar_lea.vmem %s0, 13
    %s25 = smov 3
    %v26 = vld [vmem:[%s24] ss:$16 sm:%s25]
    %27 = vrot.lane.b32.xlu0 %v26, 104
    %v28 = vpop.permute.xlu0 %27
    %vm29 = vcmask 917312
    %30 = vst.msk [vmem:[#allocation0] ss:$8 sm:$0x3] %vm29, %v28
    %s31 = scalar_lea.vmem %s0, 12
    %s32 = smov 3
    %v33 = vld [vmem:[%s31] ss:$16 sm:%s32]
    %34 = vrot.lane.b32.xlu0 %v33, 96
    %v35 = vpop.permute.xlu0 %34
    %vm36 = vcmask 851712
    %37 = vst.msk [vmem:[#allocation0] ss:$8 sm:$0x3] %vm36, %v35
    %s38 = scalar_lea.vmem %s0, 11
    %s39 = smov 3
    %v40 = vld [vmem:[%s38] ss:$16 sm:%s39]
    %41 = vrot.lane.b32.xlu0 %v40, 88
    %v42 = vpop.permute.xlu0 %41
    %vm43 = vcmask 786112
    %44 = vst.msk [vmem:[#allocation0] ss:$8 sm:$0x3] %vm43, %v42
    %s45 = scalar_lea.vmem %s0, 10
    %s46 = smov 3
    %v47 = vld [vmem:[%s45] ss:$16 sm:%s46]
    %48 = vrot.lane.b32.xlu0 %v47, 80
    %v49 = vpop.permute.xlu0 %48
    %vm50 = vcmask 720512
    %51 = vst.msk [vmem:[#allocation0] ss:$8 sm:$0x3] %vm50, %v49
    %s52 = scalar_lea.vmem %s0, 9
    %s53 = smov 3
    %v54 = vld [vmem:[%s52] ss:$16 sm:%s53]
    %55 = vrot.lane.b32.xlu0 %v54, 72
    %v56 = vpop.permute.xlu0 %55
    %vm57 = vcmask 654912
    %58 = vst.msk [vmem:[#allocation0] ss:$8 sm:$0x3] %vm57, %v56
    %s59 = scalar_lea.vmem %s0, 8
    %s60 = smov 3
    %v61 = vld [vmem:[%s59] ss:$16 sm:%s60]
    %62 = vrot.lane.b32.xlu0 %v61, 64
    %v63 = vpop.permute.xlu0 %62
    %vm64 = vcmask 589312
    %65 = vst.msk [vmem:[#allocation0] ss:$8 sm:$0x3] %vm64, %v63
    %s66 = scalar_lea.vmem %s0, 7
    %s67 = smov 3
    %v68 = vld [vmem:[%s66] ss:$16 sm:%s67]
    %69 = vrot.lane.b32.xlu0 %v68, 56
    %v70 = vpop.permute.xlu0 %69
    %vm71 = vcmask 523712
    %72 = vst.msk [vmem:[#allocation0] ss:$8 sm:$0x3] %vm71, %v70
    %s73 = scalar_lea.vmem %s0, 6
    %s74 = smov 3
    %v75 = vld [vmem:[%s73] ss:$16 sm:%s74]
    %76 = vrot.lane.b32.xlu0 %v75, 48
    %v77 = vpop.permute.xlu0 %76
    %vm78 = vcmask 458112
    %79 = vst.msk [vmem:[#allocation0] ss:$8 sm:$0x3] %vm78, %v77
    %s80 = scalar_lea.vmem %s0, 5
    %s81 = smov 3
    %v82 = vld [vmem:[%s80] ss:$16 sm:%s81]
    %83 = vrot.lane.b32.xlu0 %v82, 40
    %v84 = vpop.permute.xlu0 %83
    %vm85 = vcmask 392512
    %86 = vst.msk [vmem:[#allocation0] ss:$8 sm:$0x3] %vm85, %v84
    %s87 = scalar_lea.vmem %s0, 4
    %s88 = smov 3
    %v89 = vld [vmem:[%s87] ss:$16 sm:%s88]
    %90 = vrot.lane.b32.xlu0 %v89, 32
    %v91 = vpop.permute.xlu0 %90
    %vm92 = vcmask 326912
    %93 = vst.msk [vmem:[#allocation0] ss:$8 sm:$0x3] %vm92, %v91
    %s94 = scalar_lea.vmem %s0, 3
    %s95 = smov 3
    %v96 = vld [vmem:[%s94] ss:$16 sm:%s95]
    %s97 = scalar_lea.vmem %s0, 33
    %v98 = vld [vmem:[%s97] sm:$0x4]
    %vm99 = vcmask 1042434
    %v100 = vsel %vm99, %v98, %v96
    %101 = vrot.lane.b32.xlu0 %v100, 24
    %v102 = vpop.permute.xlu0 %101
    %vm103 = vcmask 261312
    %104 = vst.msk [vmem:[#allocation0] ss:$8 sm:$0x7] %vm103, %v102
    %s105 = scalar_lea.vmem %s0, 2
    %s106 = smov 3
    %v107 = vld [vmem:[%s105] ss:$16 sm:%s106]
    %s108 = scalar_lea.vmem %s0, 32
    %v109 = vld [vmem:[%s108] sm:$0x4]
    %vm110 = vcmask 1042434
    %v111 = vsel %vm110, %v109, %v107
    %112 = vrot.lane.b32.xlu0 %v111, 16
    %v113 = vpop.permute.xlu0 %112
    %vm114 = vcmask 195712
    %115 = vst.msk [vmem:[#allocation0] ss:$8 sm:$0x7] %vm114, %v113
    %s116 = scalar_lea.vmem %s0, 1
    %s117 = smov 3
    %v118 = vld [vmem:[%s116] ss:$16 sm:%s117]
    %s119 = scalar_lea.vmem %s0, 31
    %v120 = vld [vmem:[%s119] sm:$0x4]
    %vm121 = vcmask 1042434
    %v122 = vsel %vm121, %v120, %v118
    %123 = vrot.lane.b32.xlu0 %v122, 8
    %v124 = vpop.permute.xlu0 %123
    %vm125 = vcmask 130112
    %126 = vst.msk [vmem:[#allocation0] ss:$8 sm:$0x7] %vm125, %v124
    %s128 = sshllo.u32 0, 1
    %v130 = vld [vmem:[#allocation0] sm:%s128]
    %s131 = sshllo.u32 0, 1
    %132 = vst [vmem:[%s1] sm:%s131] %v130
    %s133 = scalar_lea.vmem [#allocation0], 8
    %v134 = vld [vmem:[%s133] sm:%s128]
    %s135 = sshllo.u32 0, 1
    %s136 = scalar_lea.vmem %s1, 1
    %137 = vst [vmem:[%s136] sm:%s135] %v134
    %s138 = scalar_lea.vmem [#allocation0], 16
    %v139 = vld [vmem:[%s138] sm:%s128]
    %s140 = sshllo.u32 0, 1
    %s141 = smul.addr 1, 2
    %s142 = scalar_lea.vmem %s1, %s141
    %143 = vst [vmem:[%s142] sm:%s140] %v139

// kernel: resnet_forward.13
$region0: #{resnet_forward.13}
  #allocation0 [shape = 'u32[]', space=smem, size = 0x4, offset = 0x4, fixed_abs, tag = 'smem constant byte address 0x4 - core index']
  #allocation1 [shape = 'u32[144,128]{1,0:T(1,128)}', space=vmem, size = 0x12000, scoped, tag = 'internal scratch']
  %s0 = inlined_call_operand.vmem [shape: f32[8,7,7,8], index: 0, kind: input, shape index: {}]
  %s1 = inlined_call_operand.vmem [shape: f32[2,6,6,8], index: 1, kind: output, shape index: {}]
  %s2 = sld [smem:[#allocation0]]
  $region14: #{resnet_forward.13} parent=0
    _
  %s4 = ssub.s32 1, %s2
  %s5 = scalar_select 0, %s4, %s2
  // Predicated region
  $region2: #{resnet_forward.13} parent=0 // pred_check
    _
  $region3: #{resnet_forward.13} parent=0 // pred_check_branch
    %7 = sbr.rel (0) target = $region5
  $region4: #{resnet_forward.13} parent=0 // pred_region
    _
  $region5: #{resnet_forward.13} parent=0 // pred_fallthru
    _
  %v8 = vld [vmem:[%s0] sm:$0x3f]
  %v9 = vld [vmem:[%s0 + $0x8] sm:$0x3f]
  %v10 = vld [vmem:[%s0 + $0x10] sm:$0x3f]
  %v11 = vld [vmem:[%s0 + $0x18] sm:$0x3f]
  %v12 = vld [vmem:[%s0 + $0x20] sm:$0x3f]
  %v13 = vld [vmem:[%s0 + $0x28] sm:$0x3f]
  %v14 = vld [vmem:[%s0 + $0x38] sm:$0x3f]
  %v15 = vld [vmem:[%s0 + $0x40] sm:$0x3f]
  %v16 = vld [vmem:[%s0 + $0x48] sm:$0x3f]
  %v17 = vld [vmem:[%s0 + $0x50] sm:$0x3f]
  %v18 = vld [vmem:[%s0 + $0x58] sm:$0x3f]
  %v19 = vld [vmem:[%s0 + $0x60] sm:$0x3f]
  %s20 = scalar_lea.vmem %s0, 112
  %v21 = vld [vmem:[%s20] sm:$0x3f]
  %v22 = vld [vmem:[%s20 + $0x8] sm:$0x3f]
  %v23 = vld [vmem:[%s20 + $0x10] sm:$0x3f]
  %v24 = vld [vmem:[%s20 + $0x18] sm:$0x3f]
  %v25 = vld [vmem:[%s20 + $0x20] sm:$0x3f]
  %v26 = vld [vmem:[%s20 + $0x28] sm:$0x3f]
  %v27 = vld [vmem:[%s20 + $0x38] sm:$0x3f]
  %v28 = vld [vmem:[%s20 + $0x40] sm:$0x3f]
  %v29 = vld [vmem:[%s20 + $0x48] sm:$0x3f]
  %v30 = vld [vmem:[%s20 + $0x50] sm:$0x3f]
  %v31 = vld [vmem:[%s20 + $0x58] sm:$0x3f]
  %v32 = vld [vmem:[%s20 + $0x60] sm:$0x3f]
  %v33 = vmax.f32 %v8, %v21
  %v34 = vmax.f32 %v9, %v22
  %v35 = vmax.f32 %v10, %v23
  %v36 = vmax.f32 %v11, %v24
  %v37 = vmax.f32 %v12, %v25
  %v38 = vmax.f32 %v13, %v26
  %v39 = vmax.f32 %v14, %v27
  %v40 = vmax.f32 %v15, %v28
  %v41 = vmax.f32 %v16, %v29
  %v42 = vmax.f32 %v17, %v30
  %v43 = vmax.f32 %v18, %v31
  %v44 = vmax.f32 %v19, %v32
  %v45 = vld [vmem:[%s0 + $0x1] sm:$0x3f]
  %v46 = vld [vmem:[%s0 + $0x9] sm:$0x3f]
  %v47 = vld [vmem:[%s0 + $0x11] sm:$0x3f]
  %v48 = vld [vmem:[%s0 + $0x19] sm:$0x3f]
  %v49 = vld [vmem:[%s0 + $0x21] sm:$0x3f]
  %v50 = vld [vmem:[%s0 + $0x29] sm:$0x3f]
  %v51 = vld [vmem:[%s0 + $0x39] sm:$0x3f]
  %v52 = vld [vmem:[%s0 + $0x41] sm:$0x3f]
  %v53 = vld [vmem:[%s0 + $0x49] sm:$0x3f]
  %v54 = vld [vmem:[%s0 + $0x51] sm:$0x3f]
  %v55 = vld [vmem:[%s0 + $0x59] sm:$0x3f]
  %v56 = vld [vmem:[%s0 + $0x61] sm:$0x3f]
  %v57 = vmax.f32 %v33, %v45
  %v58 = vmax.f32 %v34, %v46
  %v59 = vmax.f32 %v35, %v47
  %v60 = vmax.f32 %v36, %v48
  %v61 = vmax.f32 %v37, %v49
  %v62 = vmax.f32 %v38, %v50
  %v63 = vmax.f32 %v39, %v51
  %v64 = vmax.f32 %v40, %v52
  %v65 = vmax.f32 %v41, %v53
  %v66 = vmax.f32 %v42, %v54
  %v67 = vmax.f32 %v43, %v55
  %v68 = vmax.f32 %v44, %v56
  %s69 = scalar_lea.vmem %s0, 224
  %v70 = vld [vmem:[%s69] sm:$0x3f]
  %v71 = vld [vmem:[%s69 + $0x8] sm:$0x3f]
  %v72 = vld [vmem:[%s69 + $0x10] sm:$0x3f]
  %v73 = vld [vmem:[%s69 + $0x18] sm:$0x3f]
  %v74 = vld [vmem:[%s69 + $0x20] sm:$0x3f]
  %v75 = vld [vmem:[%s69 + $0x28] sm:$0x3f]
  %v76 = vld [vmem:[%s69 + $0x38] sm:$0x3f]
  %v77 = vld [vmem:[%s69 + $0x40] sm:$0x3f]
  %v78 = vld [vmem:[%s69 + $0x48] sm:$0x3f]
  %v79 = vld [vmem:[%s69 + $0x50] sm:$0x3f]
  %v80 = vld [vmem:[%s69 + $0x58] sm:$0x3f]
  %v81 = vld [vmem:[%s69 + $0x60] sm:$0x3f]
  %v82 = vmax.f32 %v57, %v70
  %v83 = vmax.f32 %v58, %v71
  %v84 = vmax.f32 %v59, %v72
  %v85 = vmax.f32 %v60, %v73
  %v86 = vmax.f32 %v61, %v74
  %v87 = vmax.f32 %v62, %v75
  %v88 = vmax.f32 %v63, %v76
  %v89 = vmax.f32 %v64, %v77
  %v90 = vmax.f32 %v65, %v78
  %v91 = vmax.f32 %v66, %v79
  %v92 = vmax.f32 %v67, %v80
  %v93 = vmax.f32 %v68, %v81
  %s94 = scalar_lea.vmem %s0, 336
  %v95 = vld [vmem:[%s94] sm:$0x3f]
  %v96 = vld [vmem:[%s94 + $0x8] sm:$0x3f]
  %v97 = vld [vmem:[%s94 + $0x10] sm:$0x3f]
  %v98 = vld [vmem:[%s94 + $0x18] sm:$0x3f]
  %v99 = vld [vmem:[%s94 + $0x20] sm:$0x3f]
  %v100 = vld [vmem:[%s94 + $0x28] sm:$0x3f]
  %v101 = vld [vmem:[%s94 + $0x38] sm:$0x3f]
  %v102 = vld [vmem:[%s94 + $0x40] sm:$0x3f]
  %v103 = vld [vmem:[%s94 + $0x48] sm:$0x3f]
  %v104 = vld [vmem:[%s94 + $0x50] sm:$0x3f]
  %v105 = vld [vmem:[%s94 + $0x58] sm:$0x3f]
  %v106 = vld [vmem:[%s94 + $0x60] sm:$0x3f]
  %v107 = vmax.f32 %v82, %v95
  %v108 = vmax.f32 %v83, %v96
  %v109 = vmax.f32 %v84, %v97
  %v110 = vmax.f32 %v85, %v98
  %v111 = vmax.f32 %v86, %v99
  %v112 = vmax.f32 %v87, %v100
  %v113 = vmax.f32 %v88, %v101
  %v114 = vmax.f32 %v89, %v102
  %v115 = vmax.f32 %v90, %v103
  %v116 = vmax.f32 %v91, %v104
  %v117 = vmax.f32 %v92, %v105
  %v118 = vmax.f32 %v93, %v106
  %v119 = vld [vmem:[%s69 + $0x1] sm:$0x3f]
  %v120 = vld [vmem:[%s69 + $0x9] sm:$0x3f]
  %v121 = vld [vmem:[%s69 + $0x11] sm:$0x3f]
  %v122 = vld [vmem:[%s69 + $0x19] sm:$0x3f]
  %v123 = vld [vmem:[%s69 + $0x21] sm:$0x3f]
  %v124 = vld [vmem:[%s69 + $0x29] sm:$0x3f]
  %v125 = vld [vmem:[%s69 + $0x39] sm:$0x3f]
  %v126 = vld [vmem:[%s69 + $0x41] sm:$0x3f]
  %v127 = vld [vmem:[%s69 + $0x49] sm:$0x3f]
  %v128 = vld [vmem:[%s69 + $0x51] sm:$0x3f]
  %v129 = vld [vmem:[%s69 + $0x59] sm:$0x3f]
  %v130 = vld [vmem:[%s69 + $0x61] sm:$0x3f]
  %v131 = vmax.f32 %v107, %v119
  %v132 = vmax.f32 %v108, %v120
  %v133 = vmax.f32 %v109, %v121
  %v134 = vmax.f32 %v110, %v122
  %v135 = vmax.f32 %v111, %v123
  %v136 = vmax.f32 %v112, %v124
  %v137 = vmax.f32 %v113, %v125
  %v138 = vmax.f32 %v114, %v126
  %v139 = vmax.f32 %v115, %v127
  %v140 = vmax.f32 %v116, %v128
  %v141 = vmax.f32 %v117, %v129
  %v142 = vmax.f32 %v118, %v130
  %s143 = scalar_lea.vmem %s0, 8
  %v144 = vld [vmem:[%s143] sm:$0x3f]
  %v145 = vld [vmem:[%s143 + $0x8] sm:$0x3f]
  %v146 = vld [vmem:[%s143 + $0x10] sm:$0x3f]
  %v147 = vld [vmem:[%s143 + $0x18] sm:$0x3f]
  %v148 = vld [vmem:[%s143 + $0x20] sm:$0x3f]
  %v149 = vld [vmem:[%s143 + $0x28] sm:$0x3f]
  %v150 = vld [vmem:[%s143 + $0x38] sm:$0x3f]
  %v151 = vld [vmem:[%s143 + $0x40] sm:$0x3f]
  %v152 = vld [vmem:[%s143 + $0x48] sm:$0x3f]
  %v153 = vld [vmem:[%s143 + $0x50] sm:$0x3f]
  %v154 = vld [vmem:[%s143 + $0x58] sm:$0x3f]
  %v155 = vld [vmem:[%s143 + $0x60] sm:$0x3f]
  %v156 = vmax.f32 %v131, %v144
  %v157 = vmax.f32 %v132, %v145
  %v158 = vmax.f32 %v133, %v146
  %v159 = vmax.f32 %v134, %v147
  %v160 = vmax.f32 %v135, %v148
  %v161 = vmax.f32 %v136, %v149
  %v162 = vmax.f32 %v137, %v150
  %v163 = vmax.f32 %v138, %v151
  %v164 = vmax.f32 %v139, %v152
  %v165 = vmax.f32 %v140, %v153
  %v166 = vmax.f32 %v141, %v154
  %v167 = vmax.f32 %v142, %v155
  %s168 = scalar_lea.vmem %s0, 120
  %v169 = vld [vmem:[%s168] sm:$0x3f]
  %v170 = vld [vmem:[%s168 + $0x8] sm:$0x3f]
  %v171 = vld [vmem:[%s168 + $0x10] sm:$0x3f]
  %v172 = vld [vmem:[%s168 + $0x18] sm:$0x3f]
  %v173 = vld [vmem:[%s168 + $0x20] sm:$0x3f]
  %v174 = vld [vmem:[%s168 + $0x28] sm:$0x3f]
  %v175 = vld [vmem:[%s168 + $0x38] sm:$0x3f]
  %v176 = vld [vmem:[%s168 + $0x40] sm:$0x3f]
  %v177 = vld [vmem:[%s168 + $0x48] sm:$0x3f]
  %v178 = vld [vmem:[%s168 + $0x50] sm:$0x3f]
  %v179 = vld [vmem:[%s168 + $0x58] sm:$0x3f]
  %v180 = vld [vmem:[%s168 + $0x60] sm:$0x3f]
  %v181 = vmax.f32 %v156, %v169
  %v182 = vmax.f32 %v157, %v170
  %v183 = vmax.f32 %v158, %v171
  %v184 = vmax.f32 %v159, %v172
  %v185 = vmax.f32 %v160, %v173
  %v186 = vmax.f32 %v161, %v174
  %v187 = vmax.f32 %v162, %v175
  %v188 = vmax.f32 %v163, %v176
  %v189 = vmax.f32 %v164, %v177
  %v190 = vmax.f32 %v165, %v178
  %v191 = vmax.f32 %v166, %v179
  %v192 = vmax.f32 %v167, %v180
  %v193 = vld [vmem:[%s143 + $0x1] sm:$0x3f]
  %v194 = vld [vmem:[%s143 + $0x9] sm:$0x3f]
  %v195 = vld [vmem:[%s143 + $0x11] sm:$0x3f]
  %v196 = vld [vmem:[%s143 + $0x19] sm:$0x3f]
  %v197 = vld [vmem:[%s143 + $0x21] sm:$0x3f]
  %v198 = vld [vmem:[%s143 + $0x29] sm:$0x3f]
  %v199 = vld [vmem:[%s143 + $0x39] sm:$0x3f]
  %v200 = vld [vmem:[%s143 + $0x41] sm:$0x3f]
  %v201 = vld [vmem:[%s143 + $0x49] sm:$0x3f]
  %v202 = vld [vmem:[%s143 + $0x51] sm:$0x3f]
  %v203 = vld [vmem:[%s143 + $0x59] sm:$0x3f]
  %v204 = vld [vmem:[%s143 + $0x61] sm:$0x3f]
  %v205 = vmax.f32 %v181, %v193
  %v206 = vmax.f32 %v182, %v194
  %v207 = vmax.f32 %v183, %v195
  %v208 = vmax.f32 %v184, %v196
  %v209 = vmax.f32 %v185, %v197
  %v210 = vmax.f32 %v186, %v198
  %v211 = vmax.f32 %v187, %v199
  %v212 = vmax.f32 %v188, %v200
  %v213 = vmax.f32 %v189, %v201
  %v214 = vmax.f32 %v190, %v202
  %v215 = vmax.f32 %v191, %v203
  %v216 = vmax.f32 %v192, %v204
  %vm217 = vcmask 62464
  %218 = vst.msk [vmem:[%s1] sm:$0x3f] %vm217, %v205
  %219 = vst.msk [vmem:[%s1 + $0x8] sm:$0x3f] %vm217, %v206
  %220 = vst.msk [vmem:[%s1 + $0x10] sm:$0x3f] %vm217, %v207
  %221 = vst.msk [vmem:[%s1 + $0x18] sm:$0x3f] %vm217, %v208
  %222 = vst.msk [vmem:[%s1 + $0x20] sm:$0x3f] %vm217, %v209
  %223 = vst.msk [vmem:[%s1 + $0x28] sm:$0x3f] %vm217, %v210
  %224 = vst.msk [vmem:[%s1 + $0x30] sm:$0x3f] %vm217, %v211
  %225 = vst.msk [vmem:[%s1 + $0x38] sm:$0x3f] %vm217, %v212
  %226 = vst.msk [vmem:[%s1 + $0x40] sm:$0x3f] %vm217, %v213
  %227 = vst.msk [vmem:[%s1 + $0x48] sm:$0x3f] %vm217, %v214
  %228 = vst.msk [vmem:[%s1 + $0x50] sm:$0x3f] %vm217, %v215
  %229 = vst.msk [vmem:[%s1 + $0x58] sm:$0x3f] %vm217, %v216
  // Predicated region
  $region6: #{resnet_forward.13} parent=0 // pred_check
    _
  $region7: #{resnet_forward.13} parent=0 // pred_check_branch
    %231 = sbr.rel (0) target = $region9
  $region8: #{resnet_forward.13} parent=0 // pred_region
    _
  $region9: #{resnet_forward.13} parent=0 // pred_fallthru
    _
  // Predicated region
  $region10: #{resnet_forward.13} parent=0 // pred_check
    _
  $region11: #{resnet_forward.13} parent=0 // pred_check_branch
    %233 = sbr.rel (0) target = $region13
  $region12: #{resnet_forward.13} parent=0 // pred_region
    _
  $region13: #{resnet_forward.13} parent=0 // pred_fallthru
    _

// kernel: resnet_forward.14
$region0: #{resnet_forward.14}
  #allocation0 [shape = 'u32[]', space=smem, size = 0x4, offset = 0x4, fixed_abs, tag = 'smem constant byte address 0x4 - core index']
  #allocation1 [shape = 'u32[144,128]{1,0:T(1,128)}', space=vmem, size = 0x12000, scoped, tag = 'internal scratch']
  %s0 = inlined_call_operand.vmem [shape: f32[2,288], index: 0, kind: input, shape index: {}]
  %s1 = inlined_call_operand.vmem [shape: f32[1,288], index: 1, kind: input, shape index: {}]
  %s2 = inlined_call_operand.vmem [shape: f32[1,288], index: 2, kind: input, shape index: {}]
  %s3 = inlined_call_operand.vmem [shape: f32[2,288], index: 3, kind: output, shape index: {}]
  %s4 = sld [smem:[#allocation0]]
  $region22: #{resnet_forward.14} parent=0
    _
  %s6 = ssub.s32 1, %s4
  %s7 = scalar_select 0, %s6, %s4
  // Predicated region
  $region2: #{resnet_forward.14} parent=0 // pred_check
    _
  $region3: #{resnet_forward.14} parent=0 // pred_check_branch
    %9 = sbr.rel (0) target = $region5
  $region4: #{resnet_forward.14} parent=0 // pred_region
    _
  $region5: #{resnet_forward.14} parent=0 // pred_fallthru
    _
  // Predicated region
  $region6: #{resnet_forward.14} parent=0 // pred_check
    _
  $region7: #{resnet_forward.14} parent=0 // pred_check_branch
    %11 = sbr.rel (0) target = $region9
  $region8: #{resnet_forward.14} parent=0 // pred_region
    _
  $region9: #{resnet_forward.14} parent=0 // pred_fallthru
    _
  // Predicated region
  $region10: #{resnet_forward.14} parent=0 // pred_check
    _
  $region11: #{resnet_forward.14} parent=0 // pred_check_branch
    %13 = sbr.rel (0) target = $region13
  $region12: #{resnet_forward.14} parent=0 // pred_region
    _
  $region13: #{resnet_forward.14} parent=0 // pred_fallthru
    _
  %v14 = vld [vmem:[%s0] sm:$0x3f]
  %v15 = vld [vmem:[%s1] sm:$0x7]
  %v17 = vlaneseq
  %v18 = vshrl.u32 %v17, 7
  %v19 = vsub.s32 0, %v18
  %v20 = vrot.slane %v15, %v19
  %v21 = vlaneseq
  %v22 = vshrl.u32 %v21, 7
  %v23 = vsub.s32 1, %v22
  %v24 = vrot.slane %v15, %v23
  %v25 = vlaneseq
  %v26 = vshrl.u32 %v25, 7
  %v27 = vsub.s32 2, %v26
  %v28 = vrot.slane %v15, %v27
  %v29 = vcombine.low %v20, %v24
  %v31 = vunpack.c.l.s4 1983009808
  %v32 = vunpack.c.0.s8 %v31
  %v33 = vlaneseq
  %v34 = vshrl.u32 %v33, 7
  %v35 = vsub.s32 %v32, %v34
  %v36 = vrot.slane %v29, %v35
  %v38 = vunpack.c.l.s4 1983009808
  %v39 = vunpack.c.0.s8 %v38
  %v40 = vlaneseq
  %v41 = vshrl.u32 %v40, 7
  %v42 = vsub.s32 %v39, %v41
  %v43 = vrot.slane %v28, %v42
  %v44 = vcombine.low %v36, %v43
  %v46 = vmul.f32 %v14, %v44
  %v47 = vld [vmem:[%s2] sm:$0x7]
  %v49 = vlaneseq
  %v50 = vshrl.u32 %v49, 7
  %v51 = vsub.s32 0, %v50
  %v52 = vrot.slane %v47, %v51
  %v53 = vlaneseq
  %v54 = vshrl.u32 %v53, 7
  %v55 = vsub.s32 1, %v54
  %v56 = vrot.slane %v47, %v55
  %v57 = vlaneseq
  %v58 = vshrl.u32 %v57, 7
  %v59 = vsub.s32 2, %v58
  %v60 = vrot.slane %v47, %v59
  %v61 = vcombine.low %v52, %v56
  %v63 = vunpack.c.l.s4 1983009808
  %v64 = vunpack.c.0.s8 %v63
  %v65 = vlaneseq
  %v66 = vshrl.u32 %v65, 7
  %v67 = vsub.s32 %v64, %v66
  %v68 = vrot.slane %v61, %v67
  %v70 = vunpack.c.l.s4 1983009808
  %v71 = vunpack.c.0.s8 %v70
  %v72 = vlaneseq
  %v73 = vshrl.u32 %v72, 7
  %v74 = vsub.s32 %v71, %v73
  %v75 = vrot.slane %v60, %v74
  %v76 = vcombine.low %v68, %v75
  %v78 = vadd.f32 %v46, %v76
  %v79 = vmax.f32 %v78, 0.0
  %vm80 = vcmask 1041408
  %vm81 = vcmask 1043458
  %vm82 = vmor %vm81, %vm80
  %vm83 = vcmask 259076
  %vm84 = vmor %vm83, %vm82
  %85 = vst.msk [vmem:[%s3] sm:$0x3f] %vm84, %v79
  // Predicated region
  $region14: #{resnet_forward.14} parent=0 // pred_check
    _
  $region15: #{resnet_forward.14} parent=0 // pred_check_branch
    %87 = sbr.rel (0) target = $region17
  $region16: #{resnet_forward.14} parent=0 // pred_region
    _
  $region17: #{resnet_forward.14} parent=0 // pred_fallthru
    _
  // Predicated region
  $region18: #{resnet_forward.14} parent=0 // pred_check
    _
  $region19: #{resnet_forward.14} parent=0 // pred_check_branch
    %89 = sbr.rel (0) target = $region21
  $region20: #{resnet_forward.14} parent=0 // pred_region
    _
  $region21: #{resnet_forward.14} parent=0 // pred_fallthru
    _

// kernel: resnet_forward.15
$region0: #{resnet_forward.15}
  #allocation0 [shape = 'u32[]', space=smem, size = 0x4, offset = 0x4, fixed_abs, tag = 'smem constant byte address 0x4 - core index']
  #allocation1 [shape = 'u32[144,128]{1,0:T(1,128)}', space=vmem, size = 0x12000, scoped, tag = 'internal scratch']
  %s0 = inlined_call_operand.vmem [shape: bf16[80,72], index: 0, kind: input, shape index: {}]
  %s1 = inlined_call_operand.vmem [shape: bf16[72,8], index: 1, kind: input, shape index: {}]
  %s2 = inlined_call_operand.vmem [shape: f32[80,8], index: 2, kind: output, shape index: {}]
  %s3 = sld [smem:[#allocation0]]
  $region18: #{resnet_forward.15} parent=0
    _
  %s5 = ssub.s32 1, %s3
  %s6 = scalar_select 0, %s5, %s3
  // Predicated region
  $region2: #{resnet_forward.15} parent=0 // pred_check
    _
  $region3: #{resnet_forward.15} parent=0 // pred_check_branch
    %8 = sbr.rel (0) target = $region5
  $region4: #{resnet_forward.15} parent=0 // pred_region
    _
  $region5: #{resnet_forward.15} parent=0 // pred_fallthru
    _
  // Predicated region
  $region6: #{resnet_forward.15} parent=0 // pred_check
    _
  $region7: #{resnet_forward.15} parent=0 // pred_check_branch
    %10 = sbr.rel (0) target = $region9
  $region8: #{resnet_forward.15} parent=0 // pred_region
    _
  $region9: #{resnet_forward.15} parent=0 // pred_fallthru
    _
  %v12 = vld [vmem:[%s0] sm:$0xf]
  %v13 = vld [vmem:[%s0 + $0x4] sm:$0xf]
  %v14 = vld [vmem:[%s0 + $0x8] sm:$0xf]
  %v15 = vld [vmem:[%s0 + $0xc] sm:$0xf]
  %v16 = vld [vmem:[%s0 + $0x10] sm:$0xf]
  %v17 = vld [vmem:[%s0 + $0x14] sm:$0xf]
  %v18 = vld [vmem:[%s0 + $0x18] sm:$0xf]
  %v19 = vld [vmem:[%s0 + $0x1c] sm:$0xf]
  %v20 = vld [vmem:[%s0 + $0x20] sm:$0xf]
  %v21 = vld [vmem:[%s0 + $0x24] sm:$0xf]
  %v22 = vld [vmem:[%s1] sm:$0xf]
  %v23 = vld [vmem:[%s1 + $0x4] sm:$0xf]
  %v24 = vld [vmem:[%s1 + $0x8] sm:$0xf]
  %v25 = vld [vmem:[%s1 + $0xc] sm:$0xf]
  %v26 = vld [vmem:[%s1 + $0x10] sm:$0xf]
  %v27 = vld [vmem:[%s1 + $0x14] sm:$0xf]
  %v28 = vld [vmem:[%s1 + $0x18] sm:$0xf]
  %v29 = vld [vmem:[%s1 + $0x1c] sm:$0xf]
  %v30 = vld [vmem:[%s1 + $0x20] sm:$0xf]
  %v41 = vunpack.c.l.b16 %v12
  %v42 = vunpack.c.l.b16 %v13
  %v43 = vunpack.c.l.b16 %v14
  %v44 = vunpack.c.l.b16 %v15
  %v45 = vunpack.c.l.b16 %v16
  %v46 = vunpack.c.l.b16 %v17
  %v47 = vunpack.c.l.b16 %v18
  %v48 = vunpack.c.l.b16 %v19
  %v49 = vunpack.c.l.b16 %v20
  %v50 = vunpack.c.l.b16 %v21
  %v51 = vpack.c.b16 %v42, %v41
  %v52 = vpack.c.b16 %v44, %v43
  %v53 = vpack.c.b16 %v46, %v45
  %v54 = vpack.c.b16 %v48, %v47
  %v55 = vpack.c.b16 %v50, %v49
  %v65 = vunpack.c.l.b16 %v22
  %v66 = vunpack.c.l.b16 %v23
  %v67 = vunpack.c.l.b16 %v24
  %v68 = vunpack.c.l.b16 %v25
  %v69 = vunpack.c.l.b16 %v26
  %v70 = vunpack.c.l.b16 %v27
  %v71 = vunpack.c.l.b16 %v28
  %v72 = vunpack.c.l.b16 %v29
  %v73 = vunpack.c.l.b16 %v30
  %v74 = vpack.c.b16 %v66, %v65
  %v75 = vpack.c.b16 %v68, %v67
  %v76 = vpack.c.b16 %v70, %v69
  %v77 = vpack.c.b16 %v72, %v71
  %v78 = vpack.c.b16 %v73, %v73
  %vm83 = vcmask 588800
  %v85 = vsel %vm83, %v51, 0
  %v88 = vsel %vm83, %v52, 0
  %v91 = vsel %vm83, %v53, 0
  %v94 = vsel %vm83, %v54, 0
  %v97 = vsel %vm83, %v55, 0
  %vm99 = vcmask 1043456
  %v101 = vsel %vm99, %v78, 0
  %103 = vmatprep.subr.bf16.mxu0 0
  %104 = vmatpush1.bf16.msra.mxu0 %v74
  %105 = vmatprep.subr.bf16.mxu0 0
  %106 = vmatpush1.bf16.msra.mxu0 %v75
  %107 = vmatprep.subr.bf16.mxu0 0
  %108 = vmatpush1.bf16.msra.mxu0 %v76
  %109 = vmatprep.subr.bf16.mxu0 0
  %110 = vmatpush1.bf16.msra.mxu0 %v77
  %111 = vmatprep.subr.bf16.mxu0 0
  %112 = vmatpush1.bf16.msra.mxu0 %v101
  %113 = vmatprep.subr.bf16.mxu0 0
  %114 = vmatpush1.bf16.msra.mxu0 0
  %115 = vmatprep.subr.bf16.mxu0 0
  %116 = vmatpush1.bf16.msra.mxu0 0
  %117 = vmatprep.subr.bf16.mxu0 0
  %118 = vmatpush1.bf16.msra.mxu0 0
  %119 = vmatprep.subr.bf16.mxu0 0
  %120 = vmatpush1.bf16.msra.mxu0 0
  %121 = vmatprep.subr.bf16.mxu0 0
  %122 = vmatpush1.bf16.msra.mxu0 0
  %123 = vmatprep.subr.bf16.mxu0 0
  %124 = vmatpush1.bf16.msra.mxu0 0
  %125 = vmatprep.subr.bf16.mxu0 0
  %126 = vmatpush1.bf16.msra.mxu0 0
  %127 = vmatprep.subr.bf16.mxu0 0
  %128 = vmatpush1.bf16.msra.mxu0 0
  %129 = vmatprep.subr.bf16.mxu0 0
  %130 = vmatpush1.bf16.msra.mxu0 0
  %131 = vmatprep.subr.bf16.mxu0 0
  %132 = vmatpush1.bf16.msra.mxu0 0
  %133 = vmatprep.subr.bf16.mxu0 0
  %134 = vmatpush1.bf16.msra.mxu0 0
  %135 = vmatprep.mubr.bf16.mxu0 0
  %136 = vmatmul.mubr.bf16.gmra.mrb[0].mxu0 %v85
  %v137 = vpop.f32.mrb[0].mxu0
  %v138 = vadd.f32 0.0, %v137
  %v139 = vpop.f32.mrb[0].mxu0
  %v140 = vpop.f32.mrb[0].mxu0
  %v141 = vadd.f32 0.0, %v140
  %v142 = vpop.f32.mrb[0].mxu0
  %143 = vmatprep.mubr.bf16.mxu0 0
  %144 = vmatmul.mubr.bf16.gmra.mrb[0].mxu0 %v88
  %v145 = vpop.f32.mrb[0].mxu0
  %v146 = vadd.f32 0.0, %v145
  %v147 = vpop.f32.mrb[0].mxu0
  %v148 = vpop.f32.mrb[0].mxu0
  %v149 = vadd.f32 0.0, %v148
  %v150 = vpop.f32.mrb[0].mxu0
  %151 = vmatprep.mubr.bf16.mxu0 0
  %152 = vmatmul.mubr.bf16.gmra.mrb[0].mxu0 %v91
  %v153 = vpop.f32.mrb[0].mxu0
  %v154 = vadd.f32 0.0, %v153
  %v155 = vpop.f32.mrb[0].mxu0
  %v156 = vpop.f32.mrb[0].mxu0
  %v157 = vadd.f32 0.0, %v156
  %v158 = vpop.f32.mrb[0].mxu0
  %159 = vmatprep.mubr.bf16.mxu0 0
  %160 = vmatmul.mubr.bf16.gmra.mrb[0].mxu0 %v94
  %v161 = vpop.f32.mrb[0].mxu0
  %v162 = vadd.f32 0.0, %v161
  %v163 = vpop.f32.mrb[0].mxu0
  %v164 = vpop.f32.mrb[0].mxu0
  %v165 = vadd.f32 0.0, %v164
  %v166 = vpop.f32.mrb[0].mxu0
  %167 = vmatprep.mubr.bf16.mxu0 0
  %168 = vmatmul.mubr.bf16.gmra.mrb[0].mxu0 %v97
  %v169 = vpop.f32.mrb[0].mxu0
  %v170 = vadd.f32 0.0, %v169
  %v171 = vpop.f32.mrb[0].mxu0
  %v172 = vpop.f32.mrb[0].mxu0
  %v173 = vadd.f32 0.0, %v172
  %v174 = vpop.f32.mrb[0].mxu0
  %175 = vdwg.mxu0
  %vm176 = vcmask 64512
  %177 = vst.msk [vmem:[%s2] sm:$0xff] %vm176, %v138
  %178 = vst.msk [vmem:[%s2 + $0x8] sm:$0xff] %vm176, %v141
  %179 = vst.msk [vmem:[%s2 + $0x10] sm:$0xff] %vm176, %v146
  %180 = vst.msk [vmem:[%s2 + $0x18] sm:$0xff] %vm176, %v149
  %181 = vst.msk [vmem:[%s2 + $0x20] sm:$0xff] %vm176, %v154
  %182 = vst.msk [vmem:[%s2 + $0x28] sm:$0xff] %vm176, %v157
  %183 = vst.msk [vmem:[%s2 + $0x30] sm:$0xff] %vm176, %v162
  %184 = vst.msk [vmem:[%s2 + $0x38] sm:$0xff] %vm176, %v165
  %185 = vst.msk [vmem:[%s2 + $0x40] sm:$0xff] %vm176, %v170
  %186 = vst.msk [vmem:[%s2 + $0x48] sm:$0xff] %vm176, %v173
  // Predicated region
  $region10: #{resnet_forward.15} parent=0 // pred_check
    _
  $region11: #{resnet_forward.15} parent=0 // pred_check_branch
    %188 = sbr.rel (0) target = $region13
  $region12: #{resnet_forward.15} parent=0 // pred_region
    _
  $region13: #{resnet_forward.15} parent=0 // pred_fallthru
    _
  // Predicated region
  $region14: #{resnet_forward.15} parent=0 // pred_check
    _
  $region15: #{resnet_forward.15} parent=0 // pred_check_branch
    %190 = sbr.rel (0) target = $region17
  $region16: #{resnet_forward.15} parent=0 // pred_region
    _
  $region17: #{resnet_forward.15} parent=0 // pred_fallthru
    _

// kernel: tile.62
$region0: #{tile.62}
  #allocation0 [shape = 's32[1]{0}', space=sflag, size = 0x4, scoped, tag = 'scoped memory for tile.62']
  %s0 = inlined_call_operand.<no memory space> [shape: f32[], index: 0, kind: input, shape index: {}]
  %s1 = inlined_call_operand.vmem [shape: f32[1,288], index: 1, kind: output, shape index: {}]
  %v2 = vstv %s0
  %3 = vst [vmem:[%s1] sm:$0x1] %v2
  %s4 = scalar_lea.vmem %s1, 1
  %5 = vst [vmem:[%s4] sm:$0x1] %v2
  %s6 = scalar_lea.vmem %s1, 2
  %7 = vst [vmem:[%s6] sm:$0x1] %v2

// kernel: resnet_forward.18
$region0: #{resnet_forward.18}
  #allocation0 [shape = 'u32[]', space=smem, size = 0x4, offset = 0x4, fixed_abs, tag = 'smem constant byte address 0x4 - core index']
  #allocation1 [shape = 'u32[144,128]{1,0:T(1,128)}', space=vmem, size = 0x12000, scoped, tag = 'internal scratch']
  %s0 = inlined_call_operand.vmem [shape: f32[2,288], index: 0, kind: input, shape index: {}]
  %s1 = inlined_call_operand.vmem [shape: f32[1,288], index: 1, kind: input, shape index: {}]
  %s2 = inlined_call_operand.vmem [shape: f32[1,288], index: 2, kind: input, shape index: {}]
  %s3 = inlined_call_operand.vmem [shape: f32[2,288], index: 3, kind: input, shape index: {}]
  %s4 = inlined_call_operand.vmem [shape: f32[1,288], index: 4, kind: input, shape index: {}]
  %s5 = inlined_call_operand.vmem [shape: f32[1,288], index: 5, kind: input, shape index: {}]
  %s6 = inlined_call_operand.vmem [shape: f32[2,288], index: 6, kind: output, shape index: {}]
  %s7 = sld [smem:[#allocation0]]
  $region34: #{resnet_forward.18} parent=0
    _
  %s9 = ssub.s32 1, %s7
  %s10 = scalar_select 0, %s9, %s7
  // Predicated region
  $region2: #{resnet_forward.18} parent=0 // pred_check
    _
  $region3: #{resnet_forward.18} parent=0 // pred_check_branch
    %12 = sbr.rel (0) target = $region5
  $region4: #{resnet_forward.18} parent=0 // pred_region
    _
  $region5: #{resnet_forward.18} parent=0 // pred_fallthru
    _
  // Predicated region
  $region6: #{resnet_forward.18} parent=0 // pred_check
    _
  $region7: #{resnet_forward.18} parent=0 // pred_check_branch
    %14 = sbr.rel (0) target = $region9
  $region8: #{resnet_forward.18} parent=0 // pred_region
    _
  $region9: #{resnet_forward.18} parent=0 // pred_fallthru
    _
  // Predicated region
  $region10: #{resnet_forward.18} parent=0 // pred_check
    _
  $region11: #{resnet_forward.18} parent=0 // pred_check_branch
    %16 = sbr.rel (0) target = $region13
  $region12: #{resnet_forward.18} parent=0 // pred_region
    _
  $region13: #{resnet_forward.18} parent=0 // pred_fallthru
    _
  // Predicated region
  $region14: #{resnet_forward.18} parent=0 // pred_check
    _
  $region15: #{resnet_forward.18} parent=0 // pred_check_branch
    %18 = sbr.rel (0) target = $region17
  $region16: #{resnet_forward.18} parent=0 // pred_region
    _
  $region17: #{resnet_forward.18} parent=0 // pred_fallthru
    _
  // Predicated region
  $region18: #{resnet_forward.18} parent=0 // pred_check
    _
  $region19: #{resnet_forward.18} parent=0 // pred_check_branch
    %20 = sbr.rel (0) target = $region21
  $region20: #{resnet_forward.18} parent=0 // pred_region
    _
  $region21: #{resnet_forward.18} parent=0 // pred_fallthru
    _
  // Predicated region
  $region22: #{resnet_forward.18} parent=0 // pred_check
    _
  $region23: #{resnet_forward.18} parent=0 // pred_check_branch
    %22 = sbr.rel (0) target = $region25
  $region24: #{resnet_forward.18} parent=0 // pred_region
    _
  $region25: #{resnet_forward.18} parent=0 // pred_fallthru
    _
  %v23 = vld [vmem:[%s0] sm:$0x3f]
  %v24 = vld [vmem:[%s1] sm:$0x7]
  %v26 = vlaneseq
  %v27 = vshrl.u32 %v26, 7
  %v28 = vsub.s32 0, %v27
  %v29 = vrot.slane %v24, %v28
  %v30 = vlaneseq
  %v31 = vshrl.u32 %v30, 7
  %v32 = vsub.s32 1, %v31
  %v33 = vrot.slane %v24, %v32
  %v34 = vlaneseq
  %v35 = vshrl.u32 %v34, 7
  %v36 = vsub.s32 2, %v35
  %v37 = vrot.slane %v24, %v36
  %v38 = vcombine.low %v29, %v33
  %v40 = vunpack.c.l.s4 1983009808
  %v41 = vunpack.c.0.s8 %v40
  %v42 = vlaneseq
  %v43 = vshrl.u32 %v42, 7
  %v44 = vsub.s32 %v41, %v43
  %v45 = vrot.slane %v38, %v44
  %v47 = vunpack.c.l.s4 1983009808
  %v48 = vunpack.c.0.s8 %v47
  %v49 = vlaneseq
  %v50 = vshrl.u32 %v49, 7
  %v51 = vsub.s32 %v48, %v50
  %v52 = vrot.slane %v37, %v51
  %v53 = vcombine.low %v45, %v52
  %v55 = vmul.f32 %v23, %v53
  %v56 = vld [vmem:[%s2] sm:$0x7]
  %v58 = vlaneseq
  %v59 = vshrl.u32 %v58, 7
  %v60 = vsub.s32 0, %v59
  %v61 = vrot.slane %v56, %v60
  %v62 = vlaneseq
  %v63 = vshrl.u32 %v62, 7
  %v64 = vsub.s32 1, %v63
  %v65 = vrot.slane %v56, %v64
  %v66 = vlaneseq
  %v67 = vshrl.u32 %v66, 7
  %v68 = vsub.s32 2, %v67
  %v69 = vrot.slane %v56, %v68
  %v70 = vcombine.low %v61, %v65
  %v72 = vunpack.c.l.s4 1983009808
  %v73 = vunpack.c.0.s8 %v72
  %v74 = vlaneseq
  %v75 = vshrl.u32 %v74, 7
  %v76 = vsub.s32 %v73, %v75
  %v77 = vrot.slane %v70, %v76
  %v79 = vunpack.c.l.s4 1983009808
  %v80 = vunpack.c.0.s8 %v79
  %v81 = vlaneseq
  %v82 = vshrl.u32 %v81, 7
  %v83 = vsub.s32 %v80, %v82
  %v84 = vrot.slane %v69, %v83
  %v85 = vcombine.low %v77, %v84
  %v87 = vadd.f32 %v55, %v85
  %v88 = vld [vmem:[%s3] sm:$0x3f]
  %v89 = vld [vmem:[%s4] sm:$0x7]
  %v91 = vlaneseq
  %v92 = vshrl.u32 %v91, 7
  %v93 = vsub.s32 0, %v92
  %v94 = vrot.slane %v89, %v93
  %v95 = vlaneseq
  %v96 = vshrl.u32 %v95, 7
  %v97 = vsub.s32 1, %v96
  %v98 = vrot.slane %v89, %v97
  %v99 = vlaneseq
  %v100 = vshrl.u32 %v99, 7
  %v101 = vsub.s32 2, %v100
  %v102 = vrot.slane %v89, %v101
  %v103 = vcombine.low %v94, %v98
  %v105 = vunpack.c.l.s4 1983009808
  %v106 = vunpack.c.0.s8 %v105
  %v107 = vlaneseq
  %v108 = vshrl.u32 %v107, 7
  %v109 = vsub.s32 %v106, %v108
  %v110 = vrot.slane %v103, %v109
  %v112 = vunpack.c.l.s4 1983009808
  %v113 = vunpack.c.0.s8 %v112
  %v114 = vlaneseq
  %v115 = vshrl.u32 %v114, 7
  %v116 = vsub.s32 %v113, %v115
  %v117 = vrot.slane %v102, %v116
  %v118 = vcombine.low %v110, %v117
  %v120 = vmul.f32 %v88, %v118
  %v121 = vld [vmem:[%s5] sm:$0x7]
  %v123 = vlaneseq
  %v124 = vshrl.u32 %v123, 7
  %v125 = vsub.s32 0, %v124
  %v126 = vrot.slane %v121, %v125
  %v127 = vlaneseq
  %v128 = vshrl.u32 %v127, 7
  %v129 = vsub.s32 1, %v128
  %v130 = vrot.slane %v121, %v129
  %v131 = vlaneseq
  %v132 = vshrl.u32 %v131, 7
  %v133 = vsub.s32 2, %v132
  %v134 = vrot.slane %v121, %v133
  %v135 = vcombine.low %v126, %v130
  %v137 = vunpack.c.l.s4 1983009808
  %v138 = vunpack.c.0.s8 %v137
  %v139 = vlaneseq
  %v140 = vshrl.u32 %v139, 7
  %v141 = vsub.s32 %v138, %v140
  %v142 = vrot.slane %v135, %v141
  %v144 = vunpack.c.l.s4 1983009808
  %v145 = vunpack.c.0.s8 %v144
  %v146 = vlaneseq
  %v147 = vshrl.u32 %v146, 7
  %v148 = vsub.s32 %v145, %v147
  %v149 = vrot.slane %v134, %v148
  %v150 = vcombine.low %v142, %v149
  %v152 = vadd.f32 %v120, %v150
  %v153 = vadd.f32 %v87, %v152
  %v154 = vmax.f32 %v153, 0.0
  %vm155 = vcmask 1041408
  %vm156 = vcmask 1043458
  %vm157 = vmor %vm156, %vm155
  %vm158 = vcmask 259076
  %vm159 = vmor %vm158, %vm157
  %160 = vst.msk [vmem:[%s6] sm:$0x3f] %vm159, %v154
  // Predicated region
  $region26: #{resnet_forward.18} parent=0 // pred_check
    _
  $region27: #{resnet_forward.18} parent=0 // pred_check_branch
    %162 = sbr.rel (0) target = $region29
  $region28: #{resnet_forward.18} parent=0 // pred_region
    _
  $region29: #{resnet_forward.18} parent=0 // pred_fallthru
    _
  // Predicated region
  $region30: #{resnet_forward.18} parent=0 // pred_check
    _
  $region31: #{resnet_forward.18} parent=0 // pred_check_branch
    %164 = sbr.rel (0) target = $region33
  $region32: #{resnet_forward.18} parent=0 // pred_region
    _
  $region33: #{resnet_forward.18} parent=0 // pred_fallthru
    _

// kernel: tile.102
$region0: #{tile.102}
  #allocation0 [shape = 's32[1]{0}', space=sflag, size = 0x4, scoped, tag = 'scoped memory for tile.102']
  %s0 = inlined_call_operand.vmem [shape: f32[16], index: 0, kind: input, shape index: {}]
  %s1 = inlined_call_operand.vmem [shape: f32[9,16], index: 1, kind: output, shape index: {}]
  // Predicated region
  $region2: #{tile.102} parent=0 // pred_check
    _
  $region3: #{tile.102} parent=0 // pred_check_branch
    %3 = sbr.rel (0) target = $region5
  $region4: #{tile.102} parent=0 // pred_region
    _
  $region5: #{tile.102} parent=0 // pred_fallthru
    _
  %v4 = vld [vmem:[%s0] ss:$0 sm:$0xff]
  %5 = vst [vmem:[%s1] sm:$0xff] %v4
  %s6 = scalar_lea.vmem %s1, 8
  %7 = vst [vmem:[%s6] sm:$0xff] %v4

// kernel: tile.103
$region0: #{tile.103}
  %s0 = inlined_call_operand.vmem [shape: f32[9,16], index: 0, kind: input, shape index: {}]
  %s1 = inlined_call_operand.vmem [shape: f32[1,144], index: 1, kind: output, shape index: {}]
  $region1: #{tile.103} parent=0
    #allocation0 [shape = 'u8[8192]{0}', space=vmem, size = 0x2000, scoped, tag = 'scoped mem for output reshape']
    %s2 = smov 3
    %v3 = vld [vmem:[%s0] ss:$8 sm:%s2]
    %vm4 = vcmask 130048
    %5 = vst.msk [vmem:[#allocation0] ss:$8 sm:$0x3] %vm4, %v3
    %s6 = scalar_lea.vmem %s0, 7
    %v7 = vld [vmem:[%s6] sm:$0x1]
    %8 = vrot.lane.b32.xlu0 %v7, 112
    %v9 = vpop.permute.xlu0 %8
    %vm10 = vcmask 1048448
    %11 = vst.msk [vmem:[#allocation0] sm:$0x1] %vm10, %v9
    %s12 = scalar_lea.vmem %s0, 6
    %v13 = vld [vmem:[%s12] sm:$0x1]
    %14 = vrot.lane.b32.xlu0 %v13, 96
    %v15 = vpop.permute.xlu0 %14
    %vm16 = vcmask 917248
    %17 = vst.msk [vmem:[#allocation0] sm:$0x1] %vm16, %v15
    %s18 = scalar_lea.vmem %s0, 5
    %v19 = vld [vmem:[%s18] sm:$0x1]
    %20 = vrot.lane.b32.xlu0 %v19, 80
    %v21 = vpop.permute.xlu0 %20
    %vm22 = vcmask 786048
    %23 = vst.msk [vmem:[#allocation0] sm:$0x1] %vm22, %v21
    %s24 = scalar_lea.vmem %s0, 4
    %v25 = vld [vmem:[%s24] sm:$0x1]
    %26 = vrot.lane.b32.xlu0 %v25, 64
    %v27 = vpop.permute.xlu0 %26
    %vm28 = vcmask 654848
    %29 = vst.msk [vmem:[#allocation0] sm:$0x1] %vm28, %v27
    %s30 = scalar_lea.vmem %s0, 3
    %v31 = vld [vmem:[%s30] sm:$0x1]
    %32 = vrot.lane.b32.xlu0 %v31, 48
    %v33 = vpop.permute.xlu0 %32
    %vm34 = vcmask 523648
    %35 = vst.msk [vmem:[#allocation0] sm:$0x1] %vm34, %v33
    %s36 = scalar_lea.vmem %s0, 2
    %v37 = vld [vmem:[%s36] sm:$0x1]
    %38 = vrot.lane.b32.xlu0 %v37, 32
    %v39 = vpop.permute.xlu0 %38
    %vm40 = vcmask 392448
    %41 = vst.msk [vmem:[#allocation0] sm:$0x1] %vm40, %v39
    %s42 = scalar_lea.vmem %s0, 1
    %v43 = vld [vmem:[%s42] sm:$0x1]
    %44 = vrot.lane.b32.xlu0 %v43, 16
    %v45 = vpop.permute.xlu0 %44
    %vm46 = vcmask 261248
    %47 = vst.msk [vmem:[#allocation0] sm:$0x1] %vm46, %v45
    %s49 = sshllo.u32 0, 1
    %v51 = vld [vmem:[#allocation0] sm:%s49]
    %s52 = sshllo.u32 0, 1
    %53 = vst [vmem:[%s1] sm:%s52] %v51
    %s54 = scalar_lea.vmem [#allocation0], 8
    %v55 = vld [vmem:[%s54] sm:%s49]
    %s56 = sshllo.u32 0, 1
    %s57 = scalar_lea.vmem %s1, 1
    %58 = vst [vmem:[%s57] sm:%s56] %v55

// kernel: resnet_forward.19
$region0: #{resnet_forward.19}
  #allocation0 [shape = 'u32[]', space=smem, size = 0x4, offset = 0x4, fixed_abs, tag = 'smem constant byte address 0x4 - core index']
  #allocation1 [shape = 'u32[144,128]{1,0:T(1,128)}', space=vmem, size = 0x12000, scoped, tag = 'internal scratch']
  %s0 = inlined_call_operand.vmem [shape: bf16[32,72], index: 0, kind: input, shape index: {}]
  %s1 = inlined_call_operand.vmem [shape: bf16[72,16], index: 1, kind: input, shape index: {}]
  %s2 = inlined_call_operand.vmem [shape: f32[32,16], index: 2, kind: output, shape index: {}]
  %s3 = sld [smem:[#allocation0]]
  $region18: #{resnet_forward.19} parent=0
    _
  %s5 = ssub.s32 1, %s3
  %s6 = scalar_select 0, %s5, %s3
  // Predicated region
  $region2: #{resnet_forward.19} parent=0 // pred_check
    _
  $region3: #{resnet_forward.19} parent=0 // pred_check_branch
    %8 = sbr.rel (0) target = $region5
  $region4: #{resnet_forward.19} parent=0 // pred_region
    _
  $region5: #{resnet_forward.19} parent=0 // pred_fallthru
    _
  // Predicated region
  $region6: #{resnet_forward.19} parent=0 // pred_check
    _
  $region7: #{resnet_forward.19} parent=0 // pred_check_branch
    %10 = sbr.rel (0) target = $region9
  $region8: #{resnet_forward.19} parent=0 // pred_region
    _
  $region9: #{resnet_forward.19} parent=0 // pred_fallthru
    _
  %v12 = vld [vmem:[%s0] sm:$0xf]
  %v13 = vld [vmem:[%s0 + $0x4] sm:$0xf]
  %v14 = vld [vmem:[%s0 + $0x8] sm:$0xf]
  %v15 = vld [vmem:[%s0 + $0xc] sm:$0xf]
  %v16 = vld [vmem:[%s1] sm:$0xf]
  %v17 = vld [vmem:[%s1 + $0x4] sm:$0xf]
  %v18 = vld [vmem:[%s1 + $0x8] sm:$0xf]
  %v19 = vld [vmem:[%s1 + $0xc] sm:$0xf]
  %v20 = vld [vmem:[%s1 + $0x10] sm:$0xf]
  %v21 = vld [vmem:[%s1 + $0x14] sm:$0xf]
  %v22 = vld [vmem:[%s1 + $0x18] sm:$0xf]
  %v23 = vld [vmem:[%s1 + $0x1c] sm:$0xf]
  %v24 = vld [vmem:[%s1 + $0x20] sm:$0xf]
  %v29 = vunpack.c.l.b16 %v12
  %v30 = vunpack.c.l.b16 %v13
  %v31 = vunpack.c.l.b16 %v14
  %v32 = vunpack.c.l.b16 %v15
  %v33 = vpack.c.b16 %v30, %v29
  %v34 = vpack.c.b16 %v32, %v31
  %v44 = vunpack.c.l.b16 %v16
  %v45 = vunpack.c.l.b16 %v17
  %v46 = vunpack.c.l.b16 %v18
  %v47 = vunpack.c.l.b16 %v19
  %v48 = vunpack.c.l.b16 %v20
  %v49 = vunpack.c.l.b16 %v21
  %v50 = vunpack.c.l.b16 %v22
  %v51 = vunpack.c.l.b16 %v23
  %v52 = vunpack.c.l.b16 %v24
  %v53 = vpack.c.b16 %v45, %v44
  %v54 = vpack.c.b16 %v47, %v46
  %v55 = vpack.c.b16 %v49, %v48
  %v56 = vpack.c.b16 %v51, %v50
  %v57 = vpack.c.b16 %v52, %v52
  %vm62 = vcmask 588800
  %v64 = vsel %vm62, %v33, 0
  %v67 = vsel %vm62, %v34, 0
  %vm69 = vcmask 1043456
  %v71 = vsel %vm69, %v57, 0
  %73 = vmatprep.subr.bf16.mxu0 0
  %74 = vmatpush1.bf16.msra.mxu0 %v53
  %75 = vmatprep.subr.bf16.mxu0 0
  %76 = vmatpush1.bf16.msra.mxu0 %v54
  %77 = vmatprep.subr.bf16.mxu0 0
  %78 = vmatpush1.bf16.msra.mxu0 %v55
  %79 = vmatprep.subr.bf16.mxu0 0
  %80 = vmatpush1.bf16.msra.mxu0 %v56
  %81 = vmatprep.subr.bf16.mxu0 0
  %82 = vmatpush1.bf16.msra.mxu0 %v71
  %83 = vmatprep.subr.bf16.mxu0 0
  %84 = vmatpush1.bf16.msra.mxu0 0
  %85 = vmatprep.subr.bf16.mxu0 0
  %86 = vmatpush1.bf16.msra.mxu0 0
  %87 = vmatprep.subr.bf16.mxu0 0
  %88 = vmatpush1.bf16.msra.mxu0 0
  %89 = vmatprep.subr.bf16.mxu0 0
  %90 = vmatpush1.bf16.msra.mxu0 0
  %91 = vmatprep.subr.bf16.mxu0 0
  %92 = vmatpush1.bf16.msra.mxu0 0
  %93 = vmatprep.subr.bf16.mxu0 0
  %94 = vmatpush1.bf16.msra.mxu0 0
  %95 = vmatprep.subr.bf16.mxu0 0
  %96 = vmatpush1.bf16.msra.mxu0 0
  %97 = vmatprep.subr.bf16.mxu0 0
  %98 = vmatpush1.bf16.msra.mxu0 0
  %99 = vmatprep.subr.bf16.mxu0 0
  %100 = vmatpush1.bf16.msra.mxu0 0
  %101 = vmatprep.subr.bf16.mxu0 0
  %102 = vmatpush1.bf16.msra.mxu0 0
  %103 = vmatprep.subr.bf16.mxu0 0
  %104 = vmatpush1.bf16.msra.mxu0 0
  %105 = vmatprep.mubr.bf16.mxu0 0
  %106 = vmatmul.mubr.bf16.gmra.mrb[0].mxu0 %v64
  %v107 = vpop.f32.mrb[0].mxu0
  %v108 = vadd.f32 0.0, %v107
  %v109 = vpop.f32.mrb[0].mxu0
  %v110 = vpop.f32.mrb[0].mxu0
  %v111 = vadd.f32 0.0, %v110
  %v112 = vpop.f32.mrb[0].mxu0
  %113 = vmatprep.mubr.bf16.mxu0 0
  %114 = vmatmul.mubr.bf16.gmra.mrb[0].mxu0 %v67
  %v115 = vpop.f32.mrb[0].mxu0
  %v116 = vadd.f32 0.0, %v115
  %v117 = vpop.f32.mrb[0].mxu0
  %v118 = vpop.f32.mrb[0].mxu0
  %v119 = vadd.f32 0.0, %v118
  %v120 = vpop.f32.mrb[0].mxu0
  %121 = vdwg.mxu0
  %vm122 = vcmask 130048
  %123 = vst.msk [vmem:[%s2] sm:$0xff] %vm122, %v108
  %124 = vst.msk [vmem:[%s2 + $0x8] sm:$0xff] %vm122, %v111
  %125 = vst.msk [vmem:[%s2 + $0x10] sm:$0xff] %vm122, %v116
  %126 = vst.msk [vmem:[%s2 + $0x18] sm:$0xff] %vm122, %v119
  // Predicated region
  $region10: #{resnet_forward.19} parent=0 // pred_check
    _
  $region11: #{resnet_forward.19} parent=0 // pred_check_branch
    %128 = sbr.rel (0) target = $region13
  $region12: #{resnet_forward.19} parent=0 // pred_region
    _
  $region13: #{resnet_forward.19} parent=0 // pred_fallthru
    _
  // Predicated region
  $region14: #{resnet_forward.19} parent=0 // pred_check
    _
  $region15: #{resnet_forward.19} parent=0 // pred_check_branch
    %130 = sbr.rel (0) target = $region17
  $region16: #{resnet_forward.19} parent=0 // pred_region
    _
  $region17: #{resnet_forward.19} parent=0 // pred_fallthru
    _

// kernel: resnet_forward.20
$region0: #{resnet_forward.20}
  #allocation0 [shape = 'u32[]', space=smem, size = 0x4, offset = 0x4, fixed_abs, tag = 'smem constant byte address 0x4 - core index']
  #allocation1 [shape = 'u32[144,128]{1,0:T(1,128)}', space=vmem, size = 0x12000, scoped, tag = 'internal scratch']
  %s0 = inlined_call_operand.vmem [shape: f32[2,144], index: 0, kind: input, shape index: {}]
  %s1 = inlined_call_operand.vmem [shape: f32[1,144], index: 1, kind: input, shape index: {}]
  %s2 = inlined_call_operand.vmem [shape: f32[1,144], index: 2, kind: input, shape index: {}]
  %s3 = inlined_call_operand.vmem [shape: f32[2,144], index: 3, kind: output, shape index: {}]
  %s4 = sld [smem:[#allocation0]]
  $region22: #{resnet_forward.20} parent=0
    _
  %s6 = ssub.s32 1, %s4
  %s7 = scalar_select 0, %s6, %s4
  // Predicated region
  $region2: #{resnet_forward.20} parent=0 // pred_check
    _
  $region3: #{resnet_forward.20} parent=0 // pred_check_branch
    %9 = sbr.rel (0) target = $region5
  $region4: #{resnet_forward.20} parent=0 // pred_region
    _
  $region5: #{resnet_forward.20} parent=0 // pred_fallthru
    _
  // Predicated region
  $region6: #{resnet_forward.20} parent=0 // pred_check
    _
  $region7: #{resnet_forward.20} parent=0 // pred_check_branch
    %11 = sbr.rel (0) target = $region9
  $region8: #{resnet_forward.20} parent=0 // pred_region
    _
  $region9: #{resnet_forward.20} parent=0 // pred_fallthru
    _
  // Predicated region
  $region10: #{resnet_forward.20} parent=0 // pred_check
    _
  $region11: #{resnet_forward.20} parent=0 // pred_check_branch
    %13 = sbr.rel (0) target = $region13
  $region12: #{resnet_forward.20} parent=0 // pred_region
    _
  $region13: #{resnet_forward.20} parent=0 // pred_fallthru
    _
  %v14 = vld [vmem:[%s0] sm:$0xf]
  %v15 = vld [vmem:[%s1] sm:$0x3]
  %v17 = vlaneseq
  %v18 = vshrl.u32 %v17, 7
  %v19 = vsub.s32 0, %v18
  %v20 = vrot.slane %v15, %v19
  %v21 = vlaneseq
  %v22 = vshrl.u32 %v21, 7
  %v23 = vsub.s32 1, %v22
  %v24 = vrot.slane %v15, %v23
  %v25 = vcombine.low %v20, %v24
  %v27 = vunpack.c.l.s4 1983009808
  %v28 = vunpack.c.0.s8 %v27
  %v29 = vlaneseq
  %v30 = vshrl.u32 %v29, 7
  %v31 = vsub.s32 %v28, %v30
  %v32 = vrot.slane %v25, %v31
  %v34 = vmul.f32 %v14, %v32
  %v35 = vld [vmem:[%s2] sm:$0x3]
  %v37 = vlaneseq
  %v38 = vshrl.u32 %v37, 7
  %v39 = vsub.s32 0, %v38
  %v40 = vrot.slane %v35, %v39
  %v41 = vlaneseq
  %v42 = vshrl.u32 %v41, 7
  %v43 = vsub.s32 1, %v42
  %v44 = vrot.slane %v35, %v43
  %v45 = vcombine.low %v40, %v44
  %v47 = vunpack.c.l.s4 1983009808
  %v48 = vunpack.c.0.s8 %v47
  %v49 = vlaneseq
  %v50 = vshrl.u32 %v49, 7
  %v51 = vsub.s32 %v48, %v50
  %v52 = vrot.slane %v45, %v51
  %v54 = vadd.f32 %v34, %v52
  %v55 = vmax.f32 %v54, 0.0
  %vm56 = vcmask 1041408
  %vm57 = vcmask 125954
  %vm58 = vmor %vm57, %vm56
  %59 = vst.msk [vmem:[%s3] sm:$0xf] %vm58, %v55
  // Predicated region
  $region14: #{resnet_forward.20} parent=0 // pred_check
    _
  $region15: #{resnet_forward.20} parent=0 // pred_check_branch
    %61 = sbr.rel (0) target = $region17
  $region16: #{resnet_forward.20} parent=0 // pred_region
    _
  $region17: #{resnet_forward.20} parent=0 // pred_fallthru
    _
  // Predicated region
  $region18: #{resnet_forward.20} parent=0 // pred_check
    _
  $region19: #{resnet_forward.20} parent=0 // pred_check_branch
    %63 = sbr.rel (0) target = $region21
  $region20: #{resnet_forward.20} parent=0 // pred_region
    _
  $region21: #{resnet_forward.20} parent=0 // pred_fallthru
    _

// kernel: resnet_forward.21
$region0: #{resnet_forward.21}
  #allocation0 [shape = 'u32[]', space=smem, size = 0x4, offset = 0x4, fixed_abs, tag = 'smem constant byte address 0x4 - core index']
  #allocation1 [shape = 'u32[144,128]{1,0:T(1,128)}', space=vmem, size = 0x12000, scoped, tag = 'internal scratch']
  %s0 = inlined_call_operand.vmem [shape: bf16[32,144], index: 0, kind: input, shape index: {}]
  %s1 = inlined_call_operand.vmem [shape: bf16[144,16], index: 1, kind: input, shape index: {}]
  %s2 = inlined_call_operand.vmem [shape: f32[32,16], index: 2, kind: output, shape index: {}]
  %s3 = sld [smem:[#allocation0]]
  $region18: #{resnet_forward.21} parent=0
    _
  %s5 = ssub.s32 1, %s3
  %s6 = scalar_select 0, %s5, %s3
  // Predicated region
  $region2: #{resnet_forward.21} parent=0 // pred_check
    _
  $region3: #{resnet_forward.21} parent=0 // pred_check_branch
    %8 = sbr.rel (0) target = $region5
  $region4: #{resnet_forward.21} parent=0 // pred_region
    _
  $region5: #{resnet_forward.21} parent=0 // pred_fallthru
    _
  // Predicated region
  $region6: #{resnet_forward.21} parent=0 // pred_check
    _
  $region7: #{resnet_forward.21} parent=0 // pred_check_branch
    %10 = sbr.rel (0) target = $region9
  $region8: #{resnet_forward.21} parent=0 // pred_region
    _
  $region9: #{resnet_forward.21} parent=0 // pred_fallthru
    _
  %v12 = vld [vmem:[%s0] sm:$0xff]
  %v13 = vld [vmem:[%s0 + $0x8] sm:$0xff]
  %v14 = vld [vmem:[%s0 + $0x10] sm:$0xff]
  %v15 = vld [vmem:[%s0 + $0x18] sm:$0xff]
  %v16 = vld [vmem:[%s1] sm:$0xf]
  %v17 = vld [vmem:[%s1 + $0x4] sm:$0xf]
  %v18 = vld [vmem:[%s1 + $0x8] sm:$0xf]
  %v19 = vld [vmem:[%s1 + $0xc] sm:$0xf]
  %v20 = vld [vmem:[%s1 + $0x10] sm:$0xf]
  %v21 = vld [vmem:[%s1 + $0x14] sm:$0xf]
  %v22 = vld [vmem:[%s1 + $0x18] sm:$0xf]
  %v23 = vld [vmem:[%s1 + $0x1c] sm:$0xf]
  %v24 = vld [vmem:[%s1 + $0x20] sm:$0xf]
  %v25 = vld [vmem:[%s1 + $0x24] sm:$0xf]
  %v26 = vld [vmem:[%s1 + $0x28] sm:$0xf]
  %v27 = vld [vmem:[%s1 + $0x2c] sm:$0xf]
  %v28 = vld [vmem:[%s1 + $0x30] sm:$0xf]
  %v29 = vld [vmem:[%s1 + $0x34] sm:$0xf]
  %v30 = vld [vmem:[%s1 + $0x38] sm:$0xf]
  %v31 = vld [vmem:[%s1 + $0x3c] sm:$0xf]
  %v32 = vld [vmem:[%s1 + $0x40] sm:$0xf]
  %v33 = vld [vmem:[%s1 + $0x44] sm:$0xf]
  %v38 = vunpack.c.l.b16 %v12
  %v39 = vunpack.c.h.b16 %v12
  %v40 = vunpack.c.l.b16 %v13
  %v41 = vunpack.c.h.b16 %v13
  %v42 = vunpack.c.l.b16 %v14
  %v43 = vunpack.c.h.b16 %v14
  %v44 = vunpack.c.l.b16 %v15
  %v45 = vunpack.c.h.b16 %v15
  %v46 = vpack.c.b16 %v40, %v38
  %v47 = vpack.c.b16 %v41, %v39
  %v48 = vpack.c.b16 %v44, %v42
  %v49 = vpack.c.b16 %v45, %v43
  %v70 = vunpack.c.l.b16 %v16
  %v71 = vunpack.c.l.b16 %v17
  %v72 = vunpack.c.l.b16 %v18
  %v73 = vunpack.c.l.b16 %v19
  %v74 = vunpack.c.l.b16 %v20
  %v75 = vunpack.c.l.b16 %v21
  %v76 = vunpack.c.l.b16 %v22
  %v77 = vunpack.c.l.b16 %v23
  %v78 = vunpack.c.l.b16 %v24
  %v79 = vunpack.c.l.b16 %v25
  %v80 = vunpack.c.l.b16 %v26
  %v81 = vunpack.c.l.b16 %v27
  %v82 = vunpack.c.l.b16 %v28
  %v83 = vunpack.c.l.b16 %v29
  %v84 = vunpack.c.l.b16 %v30
  %v85 = vunpack.c.l.b16 %v31
  %v86 = vunpack.c.l.b16 %v32
  %v87 = vunpack.c.l.b16 %v33
  %v88 = vpack.c.b16 %v71, %v70
  %v89 = vpack.c.b16 %v73, %v72
  %v90 = vpack.c.b16 %v75, %v74
  %v91 = vpack.c.b16 %v77, %v76
  %v92 = vpack.c.b16 %v79, %v78
  %v93 = vpack.c.b16 %v81, %v80
  %v94 = vpack.c.b16 %v83, %v82
  %v95 = vpack.c.b16 %v85, %v84
  %v96 = vpack.c.b16 %v87, %v86
  %vm106 = vcmask 130048
  %v108 = vsel %vm106, %v47, 0
  %v111 = vsel %vm106, %v49, 0
  %113 = vmatprep.subr.bf16.mxu0 0
  %114 = vmatpush1.bf16.msra.mxu0 %v88
  %115 = vmatprep.subr.bf16.mxu0 0
  %116 = vmatpush1.bf16.msra.mxu0 %v89
  %117 = vmatprep.subr.bf16.mxu0 0
  %118 = vmatpush1.bf16.msra.mxu0 %v90
  %119 = vmatprep.subr.bf16.mxu0 0
  %120 = vmatpush1.bf16.msra.mxu0 %v91
  %121 = vmatprep.subr.bf16.mxu0 0
  %122 = vmatpush1.bf16.msra.mxu0 %v92
  %123 = vmatprep.subr.bf16.mxu0 0
  %124 = vmatpush1.bf16.msra.mxu0 %v93
  %125 = vmatprep.subr.bf16.mxu0 0
  %126 = vmatpush1.bf16.msra.mxu0 %v94
  %127 = vmatprep.subr.bf16.mxu0 0
  %128 = vmatpush1.bf16.msra.mxu0 %v95
  %129 = vmatprep.subr.bf16.mxu0 0
  %130 = vmatpush1.bf16.msra.mxu0 %v96
  %131 = vmatprep.subr.bf16.mxu0 0
  %132 = vmatpush1.bf16.msra.mxu0 0
  %133 = vmatprep.subr.bf16.mxu0 0
  %134 = vmatpush1.bf16.msra.mxu0 0
  %135 = vmatprep.subr.bf16.mxu0 0
  %136 = vmatpush1.bf16.msra.mxu0 0
  %137 = vmatprep.subr.bf16.mxu0 0
  %138 = vmatpush1.bf16.msra.mxu0 0
  %139 = vmatprep.subr.bf16.mxu0 0
  %140 = vmatpush1.bf16.msra.mxu0 0
  %141 = vmatprep.subr.bf16.mxu0 0
  %142 = vmatpush1.bf16.msra.mxu0 0
  %143 = vmatprep.subr.bf16.mxu0 0
  %144 = vmatpush1.bf16.msra.mxu0 0
  %145 = vmatprep.mubr.bf16.mxu0 %v108
  %146 = vmatmul.mubr.bf16.gmra.mrb[0].mxu0 %v46
  %v147 = vpop.f32.mrb[0].mxu0
  %v148 = vadd.f32 0.0, %v147
  %v149 = vpop.f32.mrb[0].mxu0
  %v150 = vpop.f32.mrb[0].mxu0
  %v151 = vadd.f32 0.0, %v150
  %v152 = vpop.f32.mrb[0].mxu0
  %153 = vmatprep.mubr.bf16.mxu0 %v111
  %154 = vmatmul.mubr.bf16.gmra.mrb[0].mxu0 %v48
  %v155 = vpop.f32.mrb[0].mxu0
  %v156 = vadd.f32 0.0, %v155
  %v157 = vpop.f32.mrb[0].mxu0
  %v158 = vpop.f32.mrb[0].mxu0
  %v159 = vadd.f32 0.0, %v158
  %v160 = vpop.f32.mrb[0].mxu0
  %161 = vdwg.mxu0
  %162 = vst.msk [vmem:[%s2] sm:$0xff] %vm106, %v148
  %163 = vst.msk [vmem:[%s2 + $0x8] sm:$0xff] %vm106, %v151
  %164 = vst.msk [vmem:[%s2 + $0x10] sm:$0xff] %vm106, %v156
  %165 = vst.msk [vmem:[%s2 + $0x18] sm:$0xff] %vm106, %v159
  // Predicated region
  $region10: #{resnet_forward.21} parent=0 // pred_check
    _
  $region11: #{resnet_forward.21} parent=0 // pred_check_branch
    %167 = sbr.rel (0) target = $region13
  $region12: #{resnet_forward.21} parent=0 // pred_region
    _
  $region13: #{resnet_forward.21} parent=0 // pred_fallthru
    _
  // Predicated region
  $region14: #{resnet_forward.21} parent=0 // pred_check
    _
  $region15: #{resnet_forward.21} parent=0 // pred_check_branch
    %169 = sbr.rel (0) target = $region17
  $region16: #{resnet_forward.21} parent=0 // pred_region
    _
  $region17: #{resnet_forward.21} parent=0 // pred_fallthru
    _

// kernel: resnet_forward.22
$region0: #{resnet_forward.22}
  #allocation0 [shape = 'u32[]', space=smem, size = 0x4, offset = 0x4, fixed_abs, tag = 'smem constant byte address 0x4 - core index']
  #allocation1 [shape = 'u32[144,128]{1,0:T(1,128)}', space=vmem, size = 0x12000, scoped, tag = 'internal scratch']
  %s0 = inlined_call_operand.vmem [shape: bf16[32,8], index: 0, kind: input, shape index: {}]
  %s1 = inlined_call_operand.vmem [shape: bf16[8,16], index: 1, kind: input, shape index: {}]
  %s2 = inlined_call_operand.vmem [shape: f32[32,16], index: 2, kind: output, shape index: {}]
  %s3 = sld [smem:[#allocation0]]
  $region18: #{resnet_forward.22} parent=0
    _
  %s5 = ssub.s32 1, %s3
  %s6 = scalar_select 0, %s5, %s3
  // Predicated region
  $region2: #{resnet_forward.22} parent=0 // pred_check
    _
  $region3: #{resnet_forward.22} parent=0 // pred_check_branch
    %8 = sbr.rel (0) target = $region5
  $region4: #{resnet_forward.22} parent=0 // pred_region
    _
  $region5: #{resnet_forward.22} parent=0 // pred_fallthru
    _
  // Predicated region
  $region6: #{resnet_forward.22} parent=0 // pred_check
    _
  $region7: #{resnet_forward.22} parent=0 // pred_check_branch
    %10 = sbr.rel (0) target = $region9
  $region8: #{resnet_forward.22} parent=0 // pred_region
    _
  $region9: #{resnet_forward.22} parent=0 // pred_fallthru
    _
  %v12 = vld [vmem:[%s0] sm:$0xf]
  %v13 = vld [vmem:[%s0 + $0x4] sm:$0xf]
  %v14 = vld [vmem:[%s0 + $0x8] sm:$0xf]
  %v15 = vld [vmem:[%s0 + $0xc] sm:$0xf]
  %v16 = vld [vmem:[%s1] sm:$0xf]
  %v21 = vunpack.c.l.b16 %v12
  %v22 = vunpack.c.l.b16 %v13
  %v23 = vunpack.c.l.b16 %v14
  %v24 = vunpack.c.l.b16 %v15
  %v25 = vpack.c.b16 %v22, %v21
  %v26 = vpack.c.b16 %v24, %v23
  %vm27 = vcmask 64512
  %v29 = vsel %vm27, %v25, 0
  %v32 = vsel %vm27, %v26, 0
  %vm34 = vcmask 1043456
  %v36 = vsel %vm34, %v16, 0
  %38 = vmatprep.subr.bf16.mxu0 0
  %39 = vmatpush1.bf16.msra.mxu0 %v36
  %40 = vmatprep.subr.bf16.mxu0 0
  %41 = vmatpush1.bf16.msra.mxu0 0
  %42 = vmatprep.subr.bf16.mxu0 0
  %43 = vmatpush1.bf16.msra.mxu0 0
  %44 = vmatprep.subr.bf16.mxu0 0
  %45 = vmatpush1.bf16.msra.mxu0 0
  %46 = vmatprep.subr.bf16.mxu0 0
  %47 = vmatpush1.bf16.msra.mxu0 0
  %48 = vmatprep.subr.bf16.mxu0 0
  %49 = vmatpush1.bf16.msra.mxu0 0
  %50 = vmatprep.subr.bf16.mxu0 0
  %51 = vmatpush1.bf16.msra.mxu0 0
  %52 = vmatprep.subr.bf16.mxu0 0
  %53 = vmatpush1.bf16.msra.mxu0 0
  %54 = vmatprep.subr.bf16.mxu0 0
  %55 = vmatpush1.bf16.msra.mxu0 0
  %56 = vmatprep.subr.bf16.mxu0 0
  %57 = vmatpush1.bf16.msra.mxu0 0
  %58 = vmatprep.subr.bf16.mxu0 0
  %59 = vmatpush1.bf16.msra.mxu0 0
  %60 = vmatprep.subr.bf16.mxu0 0
  %61 = vmatpush1.bf16.msra.mxu0 0
  %62 = vmatprep.subr.bf16.mxu0 0
  %63 = vmatpush1.bf16.msra.mxu0 0
  %64 = vmatprep.subr.bf16.mxu0 0
  %65 = vmatpush1.bf16.msra.mxu0 0
  %66 = vmatprep.subr.bf16.mxu0 0
  %67 = vmatpush1.bf16.msra.mxu0 0
  %68 = vmatprep.subr.bf16.mxu0 0
  %69 = vmatpush1.bf16.msra.mxu0 0
  %70 = vmatprep.mubr.bf16.mxu0 0
  %71 = vmatmul.mubr.bf16.gmra.mrb[0].mxu0 %v29
  %v72 = vpop.f32.mrb[0].mxu0
  %v73 = vadd.f32 0.0, %v72
  %v74 = vpop.f32.mrb[0].mxu0
  %v75 = vpop.f32.mrb[0].mxu0
  %v76 = vadd.f32 0.0, %v75
  %v77 = vpop.f32.mrb[0].mxu0
  %78 = vmatprep.mubr.bf16.mxu0 0
  %79 = vmatmul.mubr.bf16.gmra.mrb[0].mxu0 %v32
  %v80 = vpop.f32.mrb[0].mxu0
  %v81 = vadd.f32 0.0, %v80
  %v82 = vpop.f32.mrb[0].mxu0
  %v83 = vpop.f32.mrb[0].mxu0
  %v84 = vadd.f32 0.0, %v83
  %v85 = vpop.f32.mrb[0].mxu0
  %86 = vdwg.mxu0
  %vm87 = vcmask 130048
  %88 = vst.msk [vmem:[%s2] sm:$0xff] %vm87, %v73
  %89 = vst.msk [vmem:[%s2 + $0x8] sm:$0xff] %vm87, %v76
  %90 = vst.msk [vmem:[%s2 + $0x10] sm:$0xff] %vm87, %v81
  %91 = vst.msk [vmem:[%s2 + $0x18] sm:$0xff] %vm87, %v84
  // Predicated region
  $region10: #{resnet_forward.22} parent=0 // pred_check
    _
  $region11: #{resnet_forward.22} parent=0 // pred_check_branch
    %93 = sbr.rel (0) target = $region13
  $region12: #{resnet_forward.22} parent=0 // pred_region
    _
  $region13: #{resnet_forward.22} parent=0 // pred_fallthru
    _
  // Predicated region
  $region14: #{resnet_forward.22} parent=0 // pred_check
    _
  $region15: #{resnet_forward.22} parent=0 // pred_check_branch
    %95 = sbr.rel (0) target = $region17
  $region16: #{resnet_forward.22} parent=0 // pred_region
    _
  $region17: #{resnet_forward.22} parent=0 // pred_fallthru
    _

// kernel: resnet_forward.23
$region0: #{resnet_forward.23}
  #allocation0 [shape = 'u32[]', space=smem, size = 0x4, offset = 0x4, fixed_abs, tag = 'smem constant byte address 0x4 - core index']
  #allocation1 [shape = 'u32[144,128]{1,0:T(1,128)}', space=vmem, size = 0x12000, scoped, tag = 'internal scratch']
  %s0 = inlined_call_operand.vmem [shape: f32[2,144], index: 0, kind: input, shape index: {}]
  %s1 = inlined_call_operand.vmem [shape: f32[1,144], index: 1, kind: input, shape index: {}]
  %s2 = inlined_call_operand.vmem [shape: f32[1,144], index: 2, kind: input, shape index: {}]
  %s3 = inlined_call_operand.vmem [shape: f32[2,144], index: 3, kind: input, shape index: {}]
  %s4 = inlined_call_operand.vmem [shape: f32[1,144], index: 4, kind: input, shape index: {}]
  %s5 = inlined_call_operand.vmem [shape: f32[1,144], index: 5, kind: input, shape index: {}]
  %s6 = inlined_call_operand.vmem [shape: f32[2,144], index: 6, kind: output, shape index: {}]
  %s7 = sld [smem:[#allocation0]]
  $region34: #{resnet_forward.23} parent=0
    _
  %s9 = ssub.s32 1, %s7
  %s10 = scalar_select 0, %s9, %s7
  // Predicated region
  $region2: #{resnet_forward.23} parent=0 // pred_check
    _
  $region3: #{resnet_forward.23} parent=0 // pred_check_branch
    %12 = sbr.rel (0) target = $region5
  $region4: #{resnet_forward.23} parent=0 // pred_region
    _
  $region5: #{resnet_forward.23} parent=0 // pred_fallthru
    _
  // Predicated region
  $region6: #{resnet_forward.23} parent=0 // pred_check
    _
  $region7: #{resnet_forward.23} parent=0 // pred_check_branch
    %14 = sbr.rel (0) target = $region9
  $region8: #{resnet_forward.23} parent=0 // pred_region
    _
  $region9: #{resnet_forward.23} parent=0 // pred_fallthru
    _
  // Predicated region
  $region10: #{resnet_forward.23} parent=0 // pred_check
    _
  $region11: #{resnet_forward.23} parent=0 // pred_check_branch
    %16 = sbr.rel (0) target = $region13
  $region12: #{resnet_forward.23} parent=0 // pred_region
    _
  $region13: #{resnet_forward.23} parent=0 // pred_fallthru
    _
  // Predicated region
  $region14: #{resnet_forward.23} parent=0 // pred_check
    _
  $region15: #{resnet_forward.23} parent=0 // pred_check_branch
    %18 = sbr.rel (0) target = $region17
  $region16: #{resnet_forward.23} parent=0 // pred_region
    _
  $region17: #{resnet_forward.23} parent=0 // pred_fallthru
    _
  // Predicated region
  $region18: #{resnet_forward.23} parent=0 // pred_check
    _
  $region19: #{resnet_forward.23} parent=0 // pred_check_branch
    %20 = sbr.rel (0) target = $region21
  $region20: #{resnet_forward.23} parent=0 // pred_region
    _
  $region21: #{resnet_forward.23} parent=0 // pred_fallthru
    _
  // Predicated region
  $region22: #{resnet_forward.23} parent=0 // pred_check
    _
  $region23: #{resnet_forward.23} parent=0 // pred_check_branch
    %22 = sbr.rel (0) target = $region25
  $region24: #{resnet_forward.23} parent=0 // pred_region
    _
  $region25: #{resnet_forward.23} parent=0 // pred_fallthru
    _
  %v23 = vld [vmem:[%s0] sm:$0xf]
  %v24 = vld [vmem:[%s1] sm:$0x3]
  %v26 = vlaneseq
  %v27 = vshrl.u32 %v26, 7
  %v28 = vsub.s32 0, %v27
  %v29 = vrot.slane %v24, %v28
  %v30 = vlaneseq
  %v31 = vshrl.u32 %v30, 7
  %v32 = vsub.s32 1, %v31
  %v33 = vrot.slane %v24, %v32
  %v34 = vcombine.low %v29, %v33
  %v36 = vunpack.c.l.s4 1983009808
  %v37 = vunpack.c.0.s8 %v36
  %v38 = vlaneseq
  %v39 = vshrl.u32 %v38, 7
  %v40 = vsub.s32 %v37, %v39
  %v41 = vrot.slane %v34, %v40
  %v43 = vmul.f32 %v23, %v41
  %v44 = vld [vmem:[%s2] sm:$0x3]
  %v46 = vlaneseq
  %v47 = vshrl.u32 %v46, 7
  %v48 = vsub.s32 0, %v47
  %v49 = vrot.slane %v44, %v48
  %v50 = vlaneseq
  %v51 = vshrl.u32 %v50, 7
  %v52 = vsub.s32 1, %v51
  %v53 = vrot.slane %v44, %v52
  %v54 = vcombine.low %v49, %v53
  %v56 = vunpack.c.l.s4 1983009808
  %v57 = vunpack.c.0.s8 %v56
  %v58 = vlaneseq
  %v59 = vshrl.u32 %v58, 7
  %v60 = vsub.s32 %v57, %v59
  %v61 = vrot.slane %v54, %v60
  %v63 = vadd.f32 %v43, %v61
  %v64 = vld [vmem:[%s3] sm:$0xf]
  %v65 = vld [vmem:[%s4] sm:$0x3]
  %v67 = vlaneseq
  %v68 = vshrl.u32 %v67, 7
  %v69 = vsub.s32 0, %v68
  %v70 = vrot.slane %v65, %v69
  %v71 = vlaneseq
  %v72 = vshrl.u32 %v71, 7
  %v73 = vsub.s32 1, %v72
  %v74 = vrot.slane %v65, %v73
  %v75 = vcombine.low %v70, %v74
  %v77 = vunpack.c.l.s4 1983009808
  %v78 = vunpack.c.0.s8 %v77
  %v79 = vlaneseq
  %v80 = vshrl.u32 %v79, 7
  %v81 = vsub.s32 %v78, %v80
  %v82 = vrot.slane %v75, %v81
  %v84 = vmul.f32 %v64, %v82
  %v85 = vld [vmem:[%s5] sm:$0x3]
  %v87 = vlaneseq
  %v88 = vshrl.u32 %v87, 7
  %v89 = vsub.s32 0, %v88
  %v90 = vrot.slane %v85, %v89
  %v91 = vlaneseq
  %v92 = vshrl.u32 %v91, 7
  %v93 = vsub.s32 1, %v92
  %v94 = vrot.slane %v85, %v93
  %v95 = vcombine.low %v90, %v94
  %v97 = vunpack.c.l.s4 1983009808
  %v98 = vunpack.c.0.s8 %v97
  %v99 = vlaneseq
  %v100 = vshrl.u32 %v99, 7
  %v101 = vsub.s32 %v98, %v100
  %v102 = vrot.slane %v95, %v101
  %v104 = vadd.f32 %v84, %v102
  %v105 = vadd.f32 %v63, %v104
  %v106 = vmax.f32 %v105, 0.0
  %vm107 = vcmask 1041408
  %vm108 = vcmask 125954
  %vm109 = vmor %vm108, %vm107
  %110 = vst.msk [vmem:[%s6] sm:$0xf] %vm109, %v106
  // Predicated region
  $region26: #{resnet_forward.23} parent=0 // pred_check
    _
  $region27: #{resnet_forward.23} parent=0 // pred_check_branch
    %112 = sbr.rel (0) target = $region29
  $region28: #{resnet_forward.23} parent=0 // pred_region
    _
  $region29: #{resnet_forward.23} parent=0 // pred_fallthru
    _
  // Predicated region
  $region30: #{resnet_forward.23} parent=0 // pred_check
    _
  $region31: #{resnet_forward.23} parent=0 // pred_check_branch
    %114 = sbr.rel (0) target = $region33
  $region32: #{resnet_forward.23} parent=0 // pred_region
    _
  $region33: #{resnet_forward.23} parent=0 // pred_fallthru
    _

</llo_original>
